<compile_context>
chip_gen: v6e
topology: v6e:2x2x1
jax: 0.10.0
libtpu: 0.0.40
codegen_flags: <defaults>
</compile_context>

<pallas_src>
import jax
import jax.numpy as jnp
from jax.experimental import pallas as pl
from jax.experimental.pallas import tpu as pltpu


def _round_up(x, m):
    return (x + m - 1) // m * m


def _sccnet_kernel(x_ref, w1_ref, w2_ref, sh2_ref, ww_ref, bfc_ref, out_ref,
                   hp_ref):
    TB, C, T = x_ref.shape
    Nu = w1_ref.shape[0]
    M2 = w2_ref.shape[0]                 # Kt * NcP (tap-stacked rows)
    NcP, T1 = sh2_ref.shape
    Kt = M2 // NcP
    n_cls = out_ref.shape[1]
    Lt = hp_ref.shape[2]
    pad = (Lt - T) // 2                  # conv2 padding = (0, 6)
    f32 = jnp.float32

    # --- firstConvBlock: Conv2d(1, Nu, (C, 1)) + BN1 (scale folded into W) ---
    w1b = jnp.broadcast_to(w1_ref[...], (TB, Nu, C))
    h = jnp.einsum('buc,bct->but', w1b, x_ref[...],
                   preferred_element_type=f32)            # (TB, Nu, T)

    # conv2's zero time-padding, built in VMEM (kept zero outside the valid
    # window; biases/BN shifts are NOT added here so the padding stays exact).
    hp_ref[...] = jnp.zeros_like(hp_ref)
    hp_ref[:, :, pad:pad + T] = h

    # --- secondConvBlock: Conv2d(1, Nc, (Nu, 12), pad (0, 6)) + BN2 ----------
    # One batched matmul against the tap-stacked (BN2-scaled) weight, then a
    # 12-tap shift-and-add (aligned sublane groups, small lane offsets); the
    # per-(c, t) shift map finishes biases / BN shifts / padding correction.
    w2b = jnp.broadcast_to(w2_ref[...], (TB, M2, Nu))
    y = jnp.einsum('bmu,but->bmt', w2b, hp_ref[...],
                   preferred_element_type=f32)            # (TB, M2, Lt)
    acc = y[:, 0:NcP, 0:T1]
    for k in range(1, Kt):
        acc = acc + y[:, k * NcP:(k + 1) * NcP, k:k + T1]
    z = acc + sh2_ref[...][None]                          # (TB, NcP, T1)
    sq = z * z                                            # SquareLayer

    # --- AvgPool2d((1,62),12) + flatten + Linear folded into ww[n, c, t] -----
    # (Dropout = identity at inference)
    cols = []
    for n in range(n_cls):
        contrib = sq * ww_ref[n][None]                    # (TB, NcP, T1)
        cols.append(jnp.sum(jnp.sum(contrib, axis=-1), axis=-1, keepdims=True))
    out_ref[...] = jnp.concatenate(cols, axis=-1) + bfc_ref[...]


def sccnet_forward(x_nchw, params, *, block_b=8):
    """x_nchw: (B, 1, C, T) as in the PyTorch module (eval-mode forward)."""
    B, one, C, T = x_nchw.shape
    assert one == 1
    Nu = params["w1"].shape[0]
    Nc, _, _, Kt = params["w2"].shape            # Kt = 12
    Nt = params["w1"].shape[3]
    assert Nt == 1, "TODO(synk): Nt > 1 temporal kernel in conv1 not implemented"
    n_cls = params["wfc"].shape[0]
    eps = 1e-5
    f32 = jnp.float32
    hi = jax.lax.Precision.HIGHEST

    T1 = T + 1                                   # conv2 output width (pad 6+6)
    P = (T1 - 62) // 12 + 1                      # avg-pool output width
    assert params["wfc"].shape[1] == Nc * P

    NcP = _round_up(Nc, 8)                       # sublane-aligned tap groups
    TB = int(block_b)                            # batch tile (multiple of 8)
    B_pad = _round_up(max(B, TB), TB)
    Lt = T + Kt                                  # 6 + T + 6 padded time width

    # ---- fold BatchNorm (eval) + conv biases into weights / shift map -------
    s1 = params["bn1_gamma"] / jnp.sqrt(params["bn1_var"] + eps)
    sh1 = params["b1"] * s1 + params["bn1_beta"] - params["bn1_mean"] * s1
    s2 = params["bn2_gamma"] / jnp.sqrt(params["bn2_var"] + eps)
    sh2c = params["b2"] * s2 + params["bn2_beta"] - params["bn2_mean"] * s2

    # conv1 weight (Nu,1,C,1) -> (Nu, C), BN1 scale folded in
    w1s = (params["w1"][:, 0, :, 0] * s1[:, None]).astype(f32)

    # conv2 weight (Nc,1,Nu,12) -> tap-stacked (Kt*NcP, Nu), BN2 scale folded
    w2s = params["w2"][:, 0] * s2[:, None, None]                  # (Nc, Nu, Kt)
    w2p = jnp.pad(w2s, ((0, NcP - Nc), (0, 0), (0, 0)))           # (NcP, Nu, Kt)
    w2stack = jnp.transpose(w2p, (2, 0, 1)).reshape(Kt * NcP, Nu).astype(f32)

    # per-(c, t) shift map: BN2 shift + conv2 bias + contribution of the
    # (conv1 bias + BN1 shift) constant through conv2's zero-padded window.
    g = jnp.einsum('cuk,u->ck', w2s, sh1, precision=hi)           # (Nc, Kt)
    j = jnp.arange(Lt)
    mask = ((j >= 6) & (j < 6 + T)).astype(f32)                   # valid columns
    mwin = jnp.stack([mask[k:k + T1] for k in range(Kt)], axis=0)  # (Kt, T1)
    corr = jnp.dot(g, mwin, precision=hi)                         # (Nc, T1)
    sh2 = corr + sh2c[:, None]
    sh2 = jnp.pad(sh2, ((0, NcP - Nc), (0, 0))).astype(f32)       # (NcP, T1)

    # avg-pool + flatten + fc folded into one per-class (c, t) weight
    t_idx = jnp.arange(T1)[None, :]
    p0 = (jnp.arange(P) * 12)[:, None]
    pm = (((t_idx >= p0) & (t_idx < p0 + 62)).astype(f32)) / 62.0  # (P, T1)
    wfc3 = params["wfc"].reshape(n_cls, Nc, P)
    ww = jnp.einsum('ncp,pt->nct', wfc3, pm, precision=hi)         # (n_cls,Nc,T1)
    ww = jnp.pad(ww, ((0, 0), (0, NcP - Nc), (0, 0))).astype(f32)  # (n_cls,NcP,T1)
    bfc = params["bfc"].reshape(1, n_cls).astype(f32)

    # input: (B,1,C,T) -> (B, C, T); only the batch axis needs padding
    x3 = x_nchw[:, 0].astype(f32)
    x_pad = jnp.pad(x3, ((0, B_pad - B), (0, 0), (0, 0)))

    flops = 2 * B_pad * (C * Nu * T + Nu * Kt * NcP * Lt + n_cls * NcP * T1)
    bytes_accessed = 4 * (x_pad.size + B_pad * n_cls + w1s.size + w2stack.size
                          + sh2.size + ww.size + bfc.size)

    out = pl.pallas_call(
        _sccnet_kernel,
        out_shape=jax.ShapeDtypeStruct((B_pad, n_cls), f32),
        grid=(B_pad // TB,),
        in_specs=[
            pl.BlockSpec((TB, C, T), lambda i: (i, 0, 0)),        # x (batch block)
            pl.BlockSpec((Nu, C), lambda i: (0, 0)),              # conv1 weight
            pl.BlockSpec((Kt * NcP, Nu), lambda i: (0, 0)),       # conv2 tap-stack
            pl.BlockSpec((NcP, T1), lambda i: (0, 0)),            # shift map
            pl.BlockSpec((n_cls, NcP, T1), lambda i: (0, 0, 0)),  # pool+fc weight
            pl.BlockSpec((1, n_cls), lambda i: (0, 0)),           # fc bias
        ],
        out_specs=pl.BlockSpec((TB, n_cls), lambda i: (i, 0)),
        scratch_shapes=[pltpu.VMEM((TB, Nu, Lt), f32)],           # padded conv1 out
        compiler_params=pltpu.CompilerParams(
            dimension_semantics=("parallel",),
            vmem_limit_bytes=32 * 1024 * 1024),
        cost_estimate=pl.CostEstimate(flops=int(flops), transcendentals=0,
                                      bytes_accessed=int(bytes_accessed)),
    )(x_pad, w1s, w2stack, sh2, ww, bfc)
    return out[:B]


def sccnet_ref(x_nchw, params):
    """Pure-JAX reference (eval-mode BN, identity dropout)."""
    eps = 1e-5
    hi = jax.lax.Precision.HIGHEST
    B, _one, C, T = x_nchw.shape
    w1 = params["w1"][:, 0, :, 0]                                      # (Nu, C)
    h = jnp.einsum("uc,bct->but", w1, x_nchw[:, 0], precision=hi)
    h = h + params["b1"][None, :, None]
    s1 = params["bn1_gamma"] / jnp.sqrt(params["bn1_var"] + eps)
    h = (h - params["bn1_mean"][None, :, None]) * s1[None, :, None] \
        + params["bn1_beta"][None, :, None]
    # permute (B,Nu,1,T)->(B,1,Nu,T): h (B,Nu,T) is already conv2's (H=Nu, W=T)
    hpad = jnp.pad(h, ((0, 0), (0, 0), (6, 6)))
    w2 = params["w2"][:, 0]                                            # (Nc, Nu, 12)
    T1 = T + 1
    out2 = params["b2"][None, :, None]
    for k in range(12):
        out2 = out2 + jnp.einsum("cu,but->bct", w2[:, :, k],
                                 hpad[:, :, k:k + T1], precision=hi)
    s2 = params["bn2_gamma"] / jnp.sqrt(params["bn2_var"] + eps)
    out2 = (out2 - params["bn2_mean"][None, :, None]) * s2[None, :, None] \
        + params["bn2_beta"][None, :, None]
    sq = out2 ** 2
    P = (T1 - 62) // 12 + 1
    pooled = jnp.stack([sq[:, :, p * 12:p * 12 + 62].mean(axis=-1)
                        for p in range(P)], axis=-1)                   # (B, Nc, P)
    feats = pooled.reshape(B, params["w2"].shape[0] * P)
    return jnp.matmul(feats, params["wfc"].T, precision=hi) + params["bfc"][None, :]


if __name__ == "__main__":
    # Small-but-consistent SCCNet config (module defaults would be
    # numClasses=4, timeSample=438, Nu=C=Nc=22, Nt=1).
    num_classes, T, Nu, C, Nc, Nt = 4, 122, 8, 8, 8, 1
    B = 16
    T1 = T + 1
    P = (T1 - 62) // 12 + 1
    fc_in = Nc * ((T - (62 - 12)) // 12)
    assert fc_in == Nc * P, "chosen timeSample must keep pool/fc shapes consistent"

    key = jax.random.PRNGKey(0)
    ks = jax.random.split(key, 16)
    params = {
        "w1": jax.random.normal(ks[0], (Nu, 1, C, Nt), jnp.float32) * 0.3,
        "b1": jax.random.normal(ks[1], (Nu,), jnp.float32) * 0.1,
        "bn1_gamma": 1.0 + 0.1 * jax.random.normal(ks[2], (Nu,), jnp.float32),
        "bn1_beta": 0.1 * jax.random.normal(ks[3], (Nu,), jnp.float32),
        "bn1_mean": 0.1 * jax.random.normal(ks[4], (Nu,), jnp.float32),
        "bn1_var": 0.5 + jax.random.uniform(ks[5], (Nu,), jnp.float32),
        "w2": jax.random.normal(ks[6], (Nc, 1, Nu, 12), jnp.float32) * 0.1,
        "b2": jax.random.normal(ks[7], (Nc,), jnp.float32) * 0.1,
        "bn2_gamma": 1.0 + 0.1 * jax.random.normal(ks[8], (Nc,), jnp.float32),
        "bn2_beta": 0.1 * jax.random.normal(ks[9], (Nc,), jnp.float32),
        "bn2_mean": 0.1 * jax.random.normal(ks[10], (Nc,), jnp.float32),
        "bn2_var": 0.5 + jax.random.uniform(ks[11], (Nc,), jnp.float32),
        "wfc": jax.random.normal(ks[12], (num_classes, fc_in), jnp.float32) * 0.1,
        "bfc": jax.random.normal(ks[13], (num_classes,), jnp.float32) * 0.1,
    }
    x = jax.random.normal(ks[14], (B, 1, C, T), jnp.float32)

    out = jax.jit(sccnet_forward)(x, params)
    out = jax.block_until_ready(out)
    assert out.shape == (B, num_classes)

    ref = sccnet_ref(x, params)
    err = float(jnp.max(jnp.abs(out - ref)))
    assert err < 5e-2, f"kernel vs reference max abs err = {err}"
    print("KERNEL_OK")
</pallas_src>

<mosaic_0001>
module attributes {stable_mosaic.version = 11 : i64} {
  func.func @_sccnet_kernel(%arg0: i32, %arg1: memref<8x8x122xf32, #tpu.memory_space<vmem>>, %arg2: memref<8x8xf32, #tpu.memory_space<vmem>>, %arg3: memref<96x8xf32, #tpu.memory_space<vmem>>, %arg4: memref<8x123xf32, #tpu.memory_space<vmem>>, %arg5: memref<4x8x123xf32, #tpu.memory_space<vmem>>, %arg6: memref<1x4xf32, #tpu.memory_space<vmem>>, %arg7: memref<8x4xf32, #tpu.memory_space<vmem>>, %arg8: memref<8x8x134xf32, #tpu.memory_space<vmem>>) attributes {dimension_semantics = [#tpu.dimension_semantics<parallel>], iteration_bounds = array<i64: 2>, scalar_prefetch = 0 : i64, scratch_operands = 1 : i64, tpu.core_type = #tpu.core_type<tc>, window_params = [{transform_indices = @transform_0, window_bounds = array<i64: 8, 8, 122>}, {pipeline_mode = #tpu.pipeline_mode<synchronous>, transform_indices = @transform_1, window_bounds = array<i64: 8, 8>}, {pipeline_mode = #tpu.pipeline_mode<synchronous>, transform_indices = @transform_2, window_bounds = array<i64: 96, 8>}, {pipeline_mode = #tpu.pipeline_mode<synchronous>, transform_indices = @transform_3, window_bounds = array<i64: 8, 123>}, {pipeline_mode = #tpu.pipeline_mode<synchronous>, transform_indices = @transform_4, window_bounds = array<i64: 4, 8, 123>}, {pipeline_mode = #tpu.pipeline_mode<synchronous>, transform_indices = @transform_5, window_bounds = array<i64: 1, 4>}, {transform_indices = @transform_6, window_bounds = array<i64: 8, 4>}]} {
    %c0 = arith.constant 0 : index
    %c0_0 = arith.constant 0 : index
    %0 = vector.load %arg2[%c0, %c0_0] : memref<8x8xf32, #tpu.memory_space<vmem>>, vector<8x8xf32>
    %1 = vector.shape_cast %0 : vector<8x8xf32> to vector<1x8x8xf32>
    %2 = vector.broadcast %1 : vector<1x8x8xf32> to vector<8x8x8xf32>
    %c0_1 = arith.constant 0 : index
    %c0_2 = arith.constant 0 : index
    %c0_3 = arith.constant 0 : index
    %3 = vector.load %arg1[%c0_1, %c0_2, %c0_3] : memref<8x8x122xf32, #tpu.memory_space<vmem>>, vector<8x8x122xf32>
    "tpu.trace_start"() <{level = 10 : i32, message = "buc,bct->but"}> : () -> ()
    %cst = arith.constant dense<0.000000e+00> : vector<8x8x122xf32>
    %4 = tpu.matmul %2, %3, %cst {dimension_numbers = #tpu.dot_dimension_numbers<[2], [1], [1], [2], [0, 0, 0, 1, 1, 2], [0], [0]>} : vector<8x8x8xf32>, vector<8x8x122xf32>, vector<8x8x122xf32> -> vector<8x8x122xf32>
    %cst_4 = arith.constant 0.000000e+00 : f32
    "tpu.trace_stop"() : () -> ()
    %5 = vector.broadcast %cst_4 : f32 to vector<8x8x134xf32>
    %c0_5 = arith.constant 0 : index
    %c0_6 = arith.constant 0 : index
    %c0_7 = arith.constant 0 : index
    %6 = vector.load %arg8[%c0_5, %c0_6, %c0_7] : memref<8x8x134xf32, #tpu.memory_space<vmem>>, vector<8x8x134xf32>
    tpu.vector_store %arg8[%c0_5, %c0_6, %c0_7], %5 {strides = array<i32>} : memref<8x8x134xf32, #tpu.memory_space<vmem>>, vector<8x8x134xf32>,
    %c0_8 = arith.constant 0 : index
    %c0_9 = arith.constant 0 : index
    %c6 = arith.constant 6 : index
    %7 = vector.load %arg8[%c0_8, %c0_9, %c6] : memref<8x8x134xf32, #tpu.memory_space<vmem>>, vector<8x8x122xf32>
    tpu.vector_store %arg8[%c0_8, %c0_9, %c6], %4 {strides = array<i32>} : memref<8x8x134xf32, #tpu.memory_space<vmem>>, vector<8x8x122xf32>,
    %c0_10 = arith.constant 0 : index
    %c0_11 = arith.constant 0 : index
    %8 = vector.load %arg3[%c0_10, %c0_11] : memref<96x8xf32, #tpu.memory_space<vmem>>, vector<96x8xf32>
    %9 = vector.shape_cast %8 : vector<96x8xf32> to vector<1x96x8xf32>
    %10 = vector.broadcast %9 : vector<1x96x8xf32> to vector<8x96x8xf32>
    %c0_12 = arith.constant 0 : index
    %c0_13 = arith.constant 0 : index
    %c0_14 = arith.constant 0 : index
    %11 = vector.load %arg8[%c0_12, %c0_13, %c0_14] : memref<8x8x134xf32, #tpu.memory_space<vmem>>, vector<8x8x134xf32>
    "tpu.trace_start"() <{level = 10 : i32, message = "bmu,but->bmt"}> : () -> ()
    %cst_15 = arith.constant dense<0.000000e+00> : vector<8x96x134xf32>
    %12 = tpu.matmul %10, %11, %cst_15 {dimension_numbers = #tpu.dot_dimension_numbers<[2], [1], [1], [2], [0, 0, 0, 1, 1, 2], [0], [0]>} : vector<8x96x8xf32>, vector<8x8x134xf32>, vector<8x96x134xf32> -> vector<8x96x134xf32>
    "tpu.trace_stop"() : () -> ()
    %13 = vector.extract_strided_slice %12 {offsets = [0, 0, 0], sizes = [8, 8, 123], strides = [1, 1, 1]} : vector<8x96x134xf32> to vector<8x8x123xf32>
    %14 = vector.extract_strided_slice %12 {offsets = [0, 8, 1], sizes = [8, 8, 123], strides = [1, 1, 1]} : vector<8x96x134xf32> to vector<8x8x123xf32>
    %15 = arith.addf %13, %14 : vector<8x8x123xf32>
    %16 = vector.extract_strided_slice %12 {offsets = [0, 16, 2], sizes = [8, 8, 123], strides = [1, 1, 1]} : vector<8x96x134xf32> to vector<8x8x123xf32>
    %17 = arith.addf %15, %16 : vector<8x8x123xf32>
    %18 = vector.extract_strided_slice %12 {offsets = [0, 24, 3], sizes = [8, 8, 123], strides = [1, 1, 1]} : vector<8x96x134xf32> to vector<8x8x123xf32>
    %19 = arith.addf %17, %18 : vector<8x8x123xf32>
    %20 = vector.extract_strided_slice %12 {offsets = [0, 32, 4], sizes = [8, 8, 123], strides = [1, 1, 1]} : vector<8x96x134xf32> to vector<8x8x123xf32>
    %21 = arith.addf %19, %20 : vector<8x8x123xf32>
    %22 = vector.extract_strided_slice %12 {offsets = [0, 40, 5], sizes = [8, 8, 123], strides = [1, 1, 1]} : vector<8x96x134xf32> to vector<8x8x123xf32>
    %23 = arith.addf %21, %22 : vector<8x8x123xf32>
    %24 = vector.extract_strided_slice %12 {offsets = [0, 48, 6], sizes = [8, 8, 123], strides = [1, 1, 1]} : vector<8x96x134xf32> to vector<8x8x123xf32>
    %25 = arith.addf %23, %24 : vector<8x8x123xf32>
    %26 = vector.extract_strided_slice %12 {offsets = [0, 56, 7], sizes = [8, 8, 123], strides = [1, 1, 1]} : vector<8x96x134xf32> to vector<8x8x123xf32>
    %27 = arith.addf %25, %26 : vector<8x8x123xf32>
    %28 = vector.extract_strided_slice %12 {offsets = [0, 64, 8], sizes = [8, 8, 123], strides = [1, 1, 1]} : vector<8x96x134xf32> to vector<8x8x123xf32>
    %29 = arith.addf %27, %28 : vector<8x8x123xf32>
    %30 = vector.extract_strided_slice %12 {offsets = [0, 72, 9], sizes = [8, 8, 123], strides = [1, 1, 1]} : vector<8x96x134xf32> to vector<8x8x123xf32>
    %31 = arith.addf %29, %30 : vector<8x8x123xf32>
    %32 = vector.extract_strided_slice %12 {offsets = [0, 80, 10], sizes = [8, 8, 123], strides = [1, 1, 1]} : vector<8x96x134xf32> to vector<8x8x123xf32>
    %33 = arith.addf %31, %32 : vector<8x8x123xf32>
    %34 = vector.extract_strided_slice %12 {offsets = [0, 88, 11], sizes = [8, 8, 123], strides = [1, 1, 1]} : vector<8x96x134xf32> to vector<8x8x123xf32>
    %35 = arith.addf %33, %34 : vector<8x8x123xf32>
    %c0_16 = arith.constant 0 : index
    %c0_17 = arith.constant 0 : index
    %36 = vector.load %arg4[%c0_16, %c0_17] : memref<8x123xf32, #tpu.memory_space<vmem>>, vector<8x123xf32>
    %37 = vector.shape_cast %36 : vector<8x123xf32> to vector<1x8x123xf32>
    %38 = vector.broadcast %37 : vector<1x8x123xf32> to vector<8x8x123xf32>
    %39 = arith.addf %35, %38 : vector<8x8x123xf32>
    %40 = arith.mulf %39, %39 : vector<8x8x123xf32>
    %c0_18 = arith.constant 0 : index
    %c0_19 = arith.constant 0 : index
    %c0_20 = arith.constant 0 : index
    %41 = vector.load %arg5[%c0_18, %c0_19, %c0_20] : memref<4x8x123xf32, #tpu.memory_space<vmem>>, vector<1x8x123xf32>
    %42 = vector.shape_cast %41 : vector<1x8x123xf32> to vector<8x123xf32>
    %43 = vector.shape_cast %42 : vector<8x123xf32> to vector<1x8x123xf32>
    %44 = vector.broadcast %43 : vector<1x8x123xf32> to vector<8x8x123xf32>
    %45 = arith.mulf %40, %44 : vector<8x8x123xf32>
    %cst_21 = arith.constant dense<0.000000e+00> : vector<8x8xf32>
    %46 = vector.multi_reduction <add>, %45, %cst_21 [2] : vector<8x8x123xf32> to vector<8x8xf32>
    %cst_22 = arith.constant dense<0.000000e+00> : vector<8xf32>
    %47 = vector.multi_reduction <add>, %46, %cst_22 [1] : vector<8x8xf32> to vector<8xf32>
    %48 = vector.shape_cast %47 : vector<8xf32> to vector<8x1xf32>
    %c1 = arith.constant 1 : index
    %c0_23 = arith.constant 0 : index
    %c0_24 = arith.constant 0 : index
    %49 = vector.load %arg5[%c1, %c0_23, %c0_24] : memref<4x8x123xf32, #tpu.memory_space<vmem>>, vector<1x8x123xf32>
    %50 = vector.shape_cast %49 : vector<1x8x123xf32> to vector<8x123xf32>
    %51 = vector.shape_cast %50 : vector<8x123xf32> to vector<1x8x123xf32>
    %52 = vector.broadcast %51 : vector<1x8x123xf32> to vector<8x8x123xf32>
    %53 = arith.mulf %40, %52 : vector<8x8x123xf32>
    %cst_25 = arith.constant dense<0.000000e+00> : vector<8x8xf32>
    %54 = vector.multi_reduction <add>, %53, %cst_25 [2] : vector<8x8x123xf32> to vector<8x8xf32>
    %cst_26 = arith.constant dense<0.000000e+00> : vector<8xf32>
    %55 = vector.multi_reduction <add>, %54, %cst_26 [1] : vector<8x8xf32> to vector<8xf32>
    %56 = vector.shape_cast %55 : vector<8xf32> to vector<8x1xf32>
    %c2 = arith.constant 2 : index
    %c0_27 = arith.constant 0 : index
    %c0_28 = arith.constant 0 : index
    %57 = vector.load %arg5[%c2, %c0_27, %c0_28] : memref<4x8x123xf32, #tpu.memory_space<vmem>>, vector<1x8x123xf32>
    %58 = vector.shape_cast %57 : vector<1x8x123xf32> to vector<8x123xf32>
    %59 = vector.shape_cast %58 : vector<8x123xf32> to vector<1x8x123xf32>
    %60 = vector.broadcast %59 : vector<1x8x123xf32> to vector<8x8x123xf32>
    %61 = arith.mulf %40, %60 : vector<8x8x123xf32>
    %cst_29 = arith.constant dense<0.000000e+00> : vector<8x8xf32>
    %62 = vector.multi_reduction <add>, %61, %cst_29 [2] : vector<8x8x123xf32> to vector<8x8xf32>
    %cst_30 = arith.constant dense<0.000000e+00> : vector<8xf32>
    %63 = vector.multi_reduction <add>, %62, %cst_30 [1] : vector<8x8xf32> to vector<8xf32>
    %64 = vector.shape_cast %63 : vector<8xf32> to vector<8x1xf32>
    %c3 = arith.constant 3 : index
    %c0_31 = arith.constant 0 : index
    %c0_32 = arith.constant 0 : index
    %65 = vector.load %arg5[%c3, %c0_31, %c0_32] : memref<4x8x123xf32, #tpu.memory_space<vmem>>, vector<1x8x123xf32>
    %66 = vector.shape_cast %65 : vector<1x8x123xf32> to vector<8x123xf32>
    %67 = vector.shape_cast %66 : vector<8x123xf32> to vector<1x8x123xf32>
    %68 = vector.broadcast %67 : vector<1x8x123xf32> to vector<8x8x123xf32>
    %69 = arith.mulf %40, %68 : vector<8x8x123xf32>
    %cst_33 = arith.constant dense<0.000000e+00> : vector<8x8xf32>
    %70 = vector.multi_reduction <add>, %69, %cst_33 [2] : vector<8x8x123xf32> to vector<8x8xf32>
    %cst_34 = arith.constant dense<0.000000e+00> : vector<8xf32>
    %71 = vector.multi_reduction <add>, %70, %cst_34 [1] : vector<8x8xf32> to vector<8xf32>
    %72 = vector.shape_cast %71 : vector<8xf32> to vector<8x1xf32>
    %73 = tpu.concatenate %48, %56, %64, %72 in 1 : vector<8x1xf32>, vector<8x1xf32>, vector<8x1xf32>, vector<8x1xf32> -> vector<8x4xf32>
    %c0_35 = arith.constant 0 : index
    %c0_36 = arith.constant 0 : index
    %74 = vector.load %arg6[%c0_35, %c0_36] : memref<1x4xf32, #tpu.memory_space<vmem>>, vector<1x4xf32>
    %75 = vector.broadcast %74 : vector<1x4xf32> to vector<8x4xf32>
    %76 = arith.addf %73, %75 : vector<8x4xf32>
    %c0_37 = arith.constant 0 : index
    %c0_38 = arith.constant 0 : index
    %77 = vector.load %arg7[%c0_37, %c0_38] : memref<8x4xf32, #tpu.memory_space<vmem>>, vector<8x4xf32>
    tpu.vector_store %arg7[%c0_37, %c0_38], %76 {strides = array<i32>} : memref<8x4xf32, #tpu.memory_space<vmem>>, vector<8x4xf32>,
    return
  }
  func.func @transform_0(%arg0: i32) -> (i32, i32, i32) {
    %c0_i32 = arith.constant 0 : i32
    %c0_i32_0 = arith.constant 0 : i32
    %c0_i32_1 = arith.constant 0 : i32
    return %arg0, %c0_i32, %c0_i32_0 : i32, i32, i32
  }
  func.func @transform_1(%arg0: i32) -> (i32, i32) {
    %c0_i32 = arith.constant 0 : i32
    %c0_i32_0 = arith.constant 0 : i32
    %c0_i32_1 = arith.constant 0 : i32
    return %c0_i32, %c0_i32_0 : i32, i32
  }
  func.func @transform_2(%arg0: i32) -> (i32, i32) {
    %c0_i32 = arith.constant 0 : i32
    %c0_i32_0 = arith.constant 0 : i32
    %c0_i32_1 = arith.constant 0 : i32
    return %c0_i32, %c0_i32_0 : i32, i32
  }
  func.func @transform_3(%arg0: i32) -> (i32, i32) {
    %c0_i32 = arith.constant 0 : i32
    %c0_i32_0 = arith.constant 0 : i32
    %c0_i32_1 = arith.constant 0 : i32
    return %c0_i32, %c0_i32_0 : i32, i32
  }
  func.func @transform_4(%arg0: i32) -> (i32, i32, i32) {
    %c0_i32 = arith.constant 0 : i32
    %c0_i32_0 = arith.constant 0 : i32
    %c0_i32_1 = arith.constant 0 : i32
    %c0_i32_2 = arith.constant 0 : i32
    return %c0_i32, %c0_i32_0, %c0_i32_1 : i32, i32, i32
  }
  func.func @transform_5(%arg0: i32) -> (i32, i32) {
    %c0_i32 = arith.constant 0 : i32
    %c0_i32_0 = arith.constant 0 : i32
    %c0_i32_1 = arith.constant 0 : i32
    return %c0_i32, %c0_i32_0 : i32, i32
  }
  func.func @transform_6(%arg0: i32) -> (i32, i32) {
    %c0_i32 = arith.constant 0 : i32
    %c0_i32_0 = arith.constant 0 : i32
    return %arg0, %c0_i32 : i32, i32
  }
}

</mosaic_0001>

<llo_original>
// kernel: sccnet_forward.1
$region0: #{sccnet_forward.1}
  #allocation0 [shape = 'u32[]', space=smem, size = 0x4, offset = 0x4, fixed_abs, tag = 'smem constant byte address 0x4 - core index']
  #allocation1 [shape = 'u32[144,128]{1,0:T(1,128)}', space=vmem, size = 0x12000, scoped, tag = 'internal scratch']
  #allocation2 [shape = 'f32[8,8,134]{2,1,0:T(8,128)}', space=vmem, size = 0x10000, scoped, tag = 'scratch operand']
  %s0 = inlined_call_operand.vmem [shape: f32[16,8,122], index: 0, kind: input, shape index: {}]
  %s1 = inlined_call_operand.vmem [shape: f32[8,8], index: 1, kind: input, shape index: {}]
  %s2 = inlined_call_operand.vmem [shape: f32[96,8], index: 2, kind: input, shape index: {}]
  %s3 = inlined_call_operand.vmem [shape: f32[8,123], index: 3, kind: input, shape index: {}]
  %s4 = inlined_call_operand.vmem [shape: f32[4,8,123], index: 4, kind: input, shape index: {}]
  %s5 = inlined_call_operand.vmem [shape: f32[1,4], index: 5, kind: input, shape index: {}]
  %s6 = inlined_call_operand.vmem [shape: f32[16,4], index: 6, kind: output, shape index: {}]
  %s7 = sld [smem:[#allocation0]]
  $region57: #{sccnet_forward.1} parent=0
    _
  %s9 = ssub.s32 1, %s7
  %s10 = scalar_select 0, %s9, %s7
  loop: start=0, step=1, limit=4
  $region2: #{sccnet_forward.1} parent=0 // loop_pre_header
    _
  $region3: #{sccnet_forward.1} parent=0 // loop_header
    %s12 = sphi 0, %s16
    %p13 = scmp.ge.s32.totalorder %s12, 4
    %s22 = sphi 0, %s24
    %s25 = sphi 0, %s22
    %s26 = sphi 0, %s25
    %s42 = sphi 0, %s26
    %s46 = sphi 0, %s46
    %s48 = sphi 0, %s46
    %s49 = sphi 0, %s48
    %s63 = sphi 0, %s49
    %s67 = sphi 0, %s67
    %s69 = sphi 0, %s67
    %s70 = sphi 0, %s69
    %s84 = sphi 0, %s70
    %s88 = sphi 0, %s88
    %s90 = sphi 0, %s88
    %s91 = sphi 0, %s90
    %s105 = sphi 0, %s91
    %s109 = sphi 0, %s109
    %s111 = sphi 0, %s109
    %s112 = sphi 0, %s111
    %s126 = sphi 0, %s112
    %s130 = sphi 0, %s130
    %s132 = sphi 0, %s130
    %s133 = sphi 0, %s132
    %s147 = sphi 0, %s133
    %s153 = sphi 0, %s155
    %s156 = sphi 0, %s153
    %s157 = sphi 0, %s156
    %s173 = sphi 0, %s157
  $region4: #{sccnet_forward.1} parent=0 // loop_header_branch
    %15 = sbr.rel (%p13) target = $region8
  $region5: #{sccnet_forward.1} parent=0 // loop_body
    %s17 = ssub.s32 %s12, 1
    %s18 = ssub.s32 %s12, 2
    %s19 = sadd.s32 %s12, 1
    %s20 = ssub.s32 %s12, %s19
    %p21 = scmp.eq.s32.totalorder %s20, 0
    %s23 = sadd.s32 %s22, 1
    %s24 = scalar_select %p21, %s22, %s23
    %p27 = pneg %p21
    %p28 = scmp.eq.s32.totalorder %s12, 1
    %p29 = por %p27, %p28
    %p30 = scmp.ne.s32.totalorder %s22, %s25
    %p31 = scmp.eq.s32.totalorder %s12, 0
    %p32 = por %p30, %p31
    %p33 = scmp.ne.s32.totalorder %s22, %s25
    %p34 = scmp.eq.s32.totalorder %s17, 1
    %p35 = por %p33, %p34
    %p36 = scmp.ne.s32.totalorder %s25, %s26
    %p37 = scmp.eq.s32.totalorder %s17, 0
    %p38 = por %p36, %p37
    %p39 = scmp.ne.s32.totalorder %s25, %s26
    %p40 = scmp.eq.s32.totalorder %s18, 1
    %p41 = por %p39, %p40
    %p43 = scmp.ne.s32.totalorder %s26, %s42
    %p44 = scmp.eq.s32.totalorder %s18, 0
    %p45 = por %p43, %p44
    %s47 = sadd.s32 %s46, 1
    %p50 = scmp.eq.s32.totalorder %s12, 1
    %p51 = scmp.ne.s32.totalorder %s46, %s48
    %p52 = scmp.eq.s32.totalorder %s12, 0
    %p53 = por %p51, %p52
    %p54 = scmp.ne.s32.totalorder %s46, %s48
    %p55 = scmp.eq.s32.totalorder %s17, 1
    %p56 = por %p54, %p55
    %p57 = scmp.ne.s32.totalorder %s48, %s49
    %p58 = scmp.eq.s32.totalorder %s17, 0
    %p59 = por %p57, %p58
    %p60 = scmp.ne.s32.totalorder %s48, %s49
    %p61 = scmp.eq.s32.totalorder %s18, 1
    %p62 = por %p60, %p61
    %p64 = scmp.ne.s32.totalorder %s49, %s63
    %p65 = scmp.eq.s32.totalorder %s18, 0
    %p66 = por %p64, %p65
    %s68 = sadd.s32 %s67, 1
    %p71 = scmp.eq.s32.totalorder %s12, 1
    %p72 = scmp.ne.s32.totalorder %s67, %s69
    %p73 = scmp.eq.s32.totalorder %s12, 0
    %p74 = por %p72, %p73
    %p75 = scmp.ne.s32.totalorder %s67, %s69
    %p76 = scmp.eq.s32.totalorder %s17, 1
    %p77 = por %p75, %p76
    %p78 = scmp.ne.s32.totalorder %s69, %s70
    %p79 = scmp.eq.s32.totalorder %s17, 0
    %p80 = por %p78, %p79
    %p81 = scmp.ne.s32.totalorder %s69, %s70
    %p82 = scmp.eq.s32.totalorder %s18, 1
    %p83 = por %p81, %p82
    %p85 = scmp.ne.s32.totalorder %s70, %s84
    %p86 = scmp.eq.s32.totalorder %s18, 0
    %p87 = por %p85, %p86
    %s89 = sadd.s32 %s88, 1
    %p92 = scmp.eq.s32.totalorder %s12, 1
    %p93 = scmp.ne.s32.totalorder %s88, %s90
    %p94 = scmp.eq.s32.totalorder %s12, 0
    %p95 = por %p93, %p94
    %p96 = scmp.ne.s32.totalorder %s88, %s90
    %p97 = scmp.eq.s32.totalorder %s17, 1
    %p98 = por %p96, %p97
    %p99 = scmp.ne.s32.totalorder %s90, %s91
    %p100 = scmp.eq.s32.totalorder %s17, 0
    %p101 = por %p99, %p100
    %p102 = scmp.ne.s32.totalorder %s90, %s91
    %p103 = scmp.eq.s32.totalorder %s18, 1
    %p104 = por %p102, %p103
    %p106 = scmp.ne.s32.totalorder %s91, %s105
    %p107 = scmp.eq.s32.totalorder %s18, 0
    %p108 = por %p106, %p107
    %s110 = sadd.s32 %s109, 1
    %p113 = scmp.eq.s32.totalorder %s12, 1
    %p114 = scmp.ne.s32.totalorder %s109, %s111
    %p115 = scmp.eq.s32.totalorder %s12, 0
    %p116 = por %p114, %p115
    %p117 = scmp.ne.s32.totalorder %s109, %s111
    %p118 = scmp.eq.s32.totalorder %s17, 1
    %p119 = por %p117, %p118
    %p120 = scmp.ne.s32.totalorder %s111, %s112
    %p121 = scmp.eq.s32.totalorder %s17, 0
    %p122 = por %p120, %p121
    %p123 = scmp.ne.s32.totalorder %s111, %s112
    %p124 = scmp.eq.s32.totalorder %s18, 1
    %p125 = por %p123, %p124
    %p127 = scmp.ne.s32.totalorder %s112, %s126
    %p128 = scmp.eq.s32.totalorder %s18, 0
    %p129 = por %p127, %p128
    %s131 = sadd.s32 %s130, 1
    %p134 = scmp.eq.s32.totalorder %s12, 1
    %p135 = scmp.ne.s32.totalorder %s130, %s132
    %p136 = scmp.eq.s32.totalorder %s12, 0
    %p137 = por %p135, %p136
    %p138 = scmp.ne.s32.totalorder %s130, %s132
    %p139 = scmp.eq.s32.totalorder %s17, 1
    %p140 = por %p138, %p139
    %p141 = scmp.ne.s32.totalorder %s132, %s133
    %p142 = scmp.eq.s32.totalorder %s17, 0
    %p143 = por %p141, %p142
    %p144 = scmp.ne.s32.totalorder %s132, %s133
    %p145 = scmp.eq.s32.totalorder %s18, 1
    %p146 = por %p144, %p145
    %p148 = scmp.ne.s32.totalorder %s133, %s147
    %p149 = scmp.eq.s32.totalorder %s18, 0
    %p150 = por %p148, %p149
    %s151 = ssub.s32 %s12, %s19
    %p152 = scmp.eq.s32.totalorder %s151, 0
    %s154 = sadd.s32 %s153, 1
    %s155 = scalar_select %p152, %s153, %s154
    %p158 = pneg %p152
    %p159 = scmp.eq.s32.totalorder %s12, 1
    %p160 = por %p158, %p159
    %p161 = scmp.ne.s32.totalorder %s153, %s156
    %p162 = scmp.eq.s32.totalorder %s12, 0
    %p163 = por %p161, %p162
    %p164 = scmp.ne.s32.totalorder %s153, %s156
    %p165 = scmp.eq.s32.totalorder %s17, 1
    %p166 = por %p164, %p165
    %p167 = scmp.ne.s32.totalorder %s156, %s157
    %p168 = scmp.eq.s32.totalorder %s17, 0
    %p169 = por %p167, %p168
    %p170 = scmp.ne.s32.totalorder %s156, %s157
    %p171 = scmp.eq.s32.totalorder %s18, 1
    %p172 = por %p170, %p171
    %p174 = scmp.ne.s32.totalorder %s157, %s173
    %p175 = scmp.eq.s32.totalorder %s18, 0
    %p176 = por %p174, %p175
    %p177 = scmp.le.s32.totalorder 1, %s12
    %p178 = scmp.lt.s32.totalorder %s12, 3
    %p179 = pnand %p177, %p178
    %p180 = pneg %p179
    // Predicated region
    $region9: #{sccnet_forward.1} parent=5 // pred_check
      _
    $region10: #{sccnet_forward.1} parent=5 // pred_check_branch
      %182 = sbr.rel (%p179) target = $region12
    $region11: #{sccnet_forward.1} parent=5 // pred_region
      %s183 = ssub.s32 %s12, 1
      // Predicated region
      $region13: #{sccnet_forward.1} parent=11 // pred_check
        %p184 = pneg %p59
      $region14: #{sccnet_forward.1} parent=11 // pred_check_branch
        %186 = sbr.rel (%p184) target = $region16
      $region15: #{sccnet_forward.1} parent=11 // pred_region
        _
      $region16: #{sccnet_forward.1} parent=11 // pred_fallthru
        _
      // Predicated region
      $region17: #{sccnet_forward.1} parent=11 // pred_check
        %p187 = pneg %p80
      $region18: #{sccnet_forward.1} parent=11 // pred_check_branch
        %189 = sbr.rel (%p187) target = $region20
      $region19: #{sccnet_forward.1} parent=11 // pred_region
        _
      $region20: #{sccnet_forward.1} parent=11 // pred_fallthru
        _
      // Predicated region
      $region21: #{sccnet_forward.1} parent=11 // pred_check
        %p190 = pneg %p101
      $region22: #{sccnet_forward.1} parent=11 // pred_check_branch
        %192 = sbr.rel (%p190) target = $region24
      $region23: #{sccnet_forward.1} parent=11 // pred_region
        _
      $region24: #{sccnet_forward.1} parent=11 // pred_fallthru
        _
      // Predicated region
      $region25: #{sccnet_forward.1} parent=11 // pred_check
        %p193 = pneg %p122
      $region26: #{sccnet_forward.1} parent=11 // pred_check_branch
        %195 = sbr.rel (%p193) target = $region28
      $region27: #{sccnet_forward.1} parent=11 // pred_region
        _
      $region28: #{sccnet_forward.1} parent=11 // pred_fallthru
        _
      // Predicated region
      $region29: #{sccnet_forward.1} parent=11 // pred_check
        %p196 = pneg %p143
      $region30: #{sccnet_forward.1} parent=11 // pred_check_branch
        %198 = sbr.rel (%p196) target = $region32
      $region31: #{sccnet_forward.1} parent=11 // pred_region
        _
      $region32: #{sccnet_forward.1} parent=11 // pred_fallthru
        _
    $region12: #{sccnet_forward.1} parent=5 // pred_fallthru
      _
    %p199 = scmp.lt.s32.totalorder %s12, 2
    // Predicated region
    $region33: #{sccnet_forward.1} parent=5 // pred_check
      %p200 = pneg %p199
    $region34: #{sccnet_forward.1} parent=5 // pred_check_branch
      %202 = sbr.rel (%p200) target = $region36
    $region35: #{sccnet_forward.1} parent=5 // pred_region
      // Predicated region
      $region37: #{sccnet_forward.1} parent=35 // pred_check
        %p203 = pneg %p32
      $region38: #{sccnet_forward.1} parent=35 // pred_check_branch
        %205 = sbr.rel (%p203) target = $region40
      $region39: #{sccnet_forward.1} parent=35 // pred_region
        %s206 = smul.u32 8, %s12
        %p207 = scmp.lt.s32.totalorder %s206, 15
        %s208 = scalar_select %p207, %s206, 15
        %s209 = smul.addr %s208, 8
        %s210 = scalar_lea.vmem %s0, %s209
        %s211 = smul.u32 8, %s12
      $region40: #{sccnet_forward.1} parent=35 // pred_fallthru
        _
    $region36: #{sccnet_forward.1} parent=5 // pred_fallthru
      _
    %p212 = scmp.le.s32.totalorder 1, %s12
    %p213 = scmp.lt.s32.totalorder %s12, 3
    %p214 = pnand %p212, %p213
    %p215 = pneg %p214
    // Predicated region
    $region41: #{sccnet_forward.1} parent=5 // pred_check
      _
    $region42: #{sccnet_forward.1} parent=5 // pred_check_branch
      %217 = sbr.rel (%p214) target = $region44
    $region43: #{sccnet_forward.1} parent=5 // pred_region
      %s218 = ssub.s32 %s12, 1
      %s219 = smul.u32 8, %s17
      %p220 = scmp.lt.s32.totalorder %s219, 15
      %s221 = scalar_select %p220, %s219, 15
      %s222 = smul.addr %s221, 8
      %s223 = scalar_lea.vmem %s0, %s222
      %p224 = pneg %p38
      %p225 = pneg %p35
      %p226 = pneg %p59
      %p227 = pneg %p56
      %p228 = pneg %p80
      %p229 = pneg %p77
      %p230 = pneg %p101
      %p231 = pneg %p98
      %p232 = pneg %p122
      %p233 = pneg %p119
      %p234 = pneg %p143
      %p235 = pneg %p140
      %p236 = pneg %p169
      %p237 = pneg %p166
      %p238 = scmp.lt.s32.totalorder %s17, 1
      %s239 = scalar_select %p238, %s17, 1
      %s240 = smul.addr %s239, 8
      %s241 = scalar_lea.vmem %s6, %s240
      %s242 = smul.u32 8, %s17
      %p243 = scmp.lt.s32.totalorder %s242, 15
      %s244 = scalar_select %p243, %s242, 15
      %s245 = smul.addr %s244, 8
      %s246 = scalar_lea.vmem %s0, %s245
      %s247 = smul.u32 8, %s17
      %p248 = scmp.lt.s32.totalorder %s17, 1
      %s249 = scalar_select %p248, %s17, 1
      %s250 = smul.addr %s249, 8
      %s251 = scalar_lea.vmem %s6, %s250
      %v252 = vld [vmem:[%s1] sm:$0xff]
      %v253 = vld [vmem:[%s246] sm:$0xff]
      %v254 = vld [vmem:[%s246 + $0x8] sm:$0xff]
      %v255 = vld [vmem:[%s246 + $0x10] sm:$0xff]
      %v256 = vld [vmem:[%s246 + $0x18] sm:$0xff]
      %v257 = vld [vmem:[%s246 + $0x20] sm:$0xff]
      %v258 = vld [vmem:[%s246 + $0x28] sm:$0xff]
      %v259 = vld [vmem:[%s246 + $0x30] sm:$0xff]
      %v260 = vld [vmem:[%s246 + $0x38] sm:$0xff]
      %vm261 = vcmask 64512
      %v263 = vsel %vm261, %v252, 0
      %265 = vmatprep.subr.mxu0 0.0
      %266 = vmatpush1.msra.mxu0 0.0
      %267 = vmatprep.subr.mxu0 0.0
      %268 = vmatpush1.msra.mxu0 0.0
      %269 = vmatprep.subr.mxu0 0.0
      %270 = vmatpush1.msra.mxu0 0.0
      %271 = vmatprep.subr.mxu0 0.0
      %272 = vmatpush1.msra.mxu0 0.0
      %273 = vmatprep.subr.mxu0 0.0
      %274 = vmatpush1.msra.mxu0 0.0
      %275 = vmatprep.subr.mxu0 0.0
      %276 = vmatpush1.msra.mxu0 0.0
      %277 = vmatprep.subr.mxu0 0.0
      %278 = vmatpush1.msra.mxu0 0.0
      %279 = vmatprep.subr.mxu0 0.0
      %280 = vmatpush1.msra.mxu0 0.0
      %281 = vmatprep.subr.mxu0 0.0
      %282 = vmatpush1.msra.mxu0 0.0
      %283 = vmatprep.subr.mxu0 0.0
      %284 = vmatpush1.msra.mxu0 0.0
      %285 = vmatprep.subr.mxu0 0.0
      %286 = vmatpush1.msra.mxu0 0.0
      %287 = vmatprep.subr.mxu0 0.0
      %288 = vmatpush1.msra.mxu0 0.0
      %289 = vmatprep.subr.mxu0 0.0
      %290 = vmatpush1.msra.mxu0 0.0
      %291 = vmatprep.subr.mxu0 0.0
      %292 = vmatpush1.msra.mxu0 0.0
      %293 = vmatprep.subr.mxu0 0.0
      %294 = vmatpush1.msra.mxu0 0.0
      %295 = vmatprep.subr.mxu0 0.0
      %296 = vmatpush1.msra.mxu0 %v253
      %297 = vmatprep.subr.mxu0 0.0
      %298 = vmatpush2.msra.mxu0 0.0
      %299 = vmatprep.subr.mxu0 0.0
      %300 = vmatpush2.msra.mxu0 0.0
      %301 = vmatprep.subr.mxu0 0.0
      %302 = vmatpush2.msra.mxu0 0.0
      %303 = vmatprep.subr.mxu0 0.0
      %304 = vmatpush2.msra.mxu0 0.0
      %305 = vmatprep.subr.mxu0 0.0
      %306 = vmatpush2.msra.mxu0 0.0
      %307 = vmatprep.subr.mxu0 0.0
      %308 = vmatpush2.msra.mxu0 0.0
      %309 = vmatprep.subr.mxu0 0.0
      %310 = vmatpush2.msra.mxu0 0.0
      %311 = vmatprep.subr.mxu0 0.0
      %312 = vmatpush2.msra.mxu0 0.0
      %313 = vmatprep.subr.mxu0 0.0
      %314 = vmatpush2.msra.mxu0 0.0
      %315 = vmatprep.subr.mxu0 0.0
      %316 = vmatpush2.msra.mxu0 0.0
      %317 = vmatprep.subr.mxu0 0.0
      %318 = vmatpush2.msra.mxu0 0.0
      %319 = vmatprep.subr.mxu0 0.0
      %320 = vmatpush2.msra.mxu0 0.0
      %321 = vmatprep.subr.mxu0 0.0
      %322 = vmatpush2.msra.mxu0 0.0
      %323 = vmatprep.subr.mxu0 0.0
      %324 = vmatpush2.msra.mxu0 0.0
      %325 = vmatprep.subr.mxu0 0.0
      %326 = vmatpush2.msra.mxu0 0.0
      %327 = vmatprep.subr.mxu0 0.0
      %328 = vmatpush2.msra.mxu0 0.0
      %329 = vmatprep.mubr.f32.mxu0 0.0
      %330 = vmatmul.mubr.f32.gmra.mxu0 %v263
      %v331 = vpop.f32.mrf.mxu0
      %v332 = vadd.f32 0.0, %v331
      %v333 = vpop.f32.mrf.mxu0
      %334 = vdwg.mxu0
      %335 = vmatprep.subr.mxu0 0.0
      %336 = vmatpush1.msra.mxu0 0.0
      %337 = vmatprep.subr.mxu0 0.0
      %338 = vmatpush1.msra.mxu0 0.0
      %339 = vmatprep.subr.mxu0 0.0
      %340 = vmatpush1.msra.mxu0 0.0
      %341 = vmatprep.subr.mxu0 0.0
      %342 = vmatpush1.msra.mxu0 0.0
      %343 = vmatprep.subr.mxu0 0.0
      %344 = vmatpush1.msra.mxu0 0.0
      %345 = vmatprep.subr.mxu0 0.0
      %346 = vmatpush1.msra.mxu0 0.0
      %347 = vmatprep.subr.mxu0 0.0
      %348 = vmatpush1.msra.mxu0 0.0
      %349 = vmatprep.subr.mxu0 0.0
      %350 = vmatpush1.msra.mxu0 0.0
      %351 = vmatprep.subr.mxu0 0.0
      %352 = vmatpush1.msra.mxu0 0.0
      %353 = vmatprep.subr.mxu0 0.0
      %354 = vmatpush1.msra.mxu0 0.0
      %355 = vmatprep.subr.mxu0 0.0
      %356 = vmatpush1.msra.mxu0 0.0
      %357 = vmatprep.subr.mxu0 0.0
      %358 = vmatpush1.msra.mxu0 0.0
      %359 = vmatprep.subr.mxu0 0.0
      %360 = vmatpush1.msra.mxu0 0.0
      %361 = vmatprep.subr.mxu0 0.0
      %362 = vmatpush1.msra.mxu0 0.0
      %363 = vmatprep.subr.mxu0 0.0
      %364 = vmatpush1.msra.mxu0 0.0
      %365 = vmatprep.subr.mxu0 0.0
      %366 = vmatpush1.msra.mxu0 %v254
      %367 = vmatprep.subr.mxu0 0.0
      %368 = vmatpush2.msra.mxu0 0.0
      %369 = vmatprep.subr.mxu0 0.0
      %370 = vmatpush2.msra.mxu0 0.0
      %371 = vmatprep.subr.mxu0 0.0
      %372 = vmatpush2.msra.mxu0 0.0
      %373 = vmatprep.subr.mxu0 0.0
      %374 = vmatpush2.msra.mxu0 0.0
      %375 = vmatprep.subr.mxu0 0.0
      %376 = vmatpush2.msra.mxu0 0.0
      %377 = vmatprep.subr.mxu0 0.0
      %378 = vmatpush2.msra.mxu0 0.0
      %379 = vmatprep.subr.mxu0 0.0
      %380 = vmatpush2.msra.mxu0 0.0
      %381 = vmatprep.subr.mxu0 0.0
      %382 = vmatpush2.msra.mxu0 0.0
      %383 = vmatprep.subr.mxu0 0.0
      %384 = vmatpush2.msra.mxu0 0.0
      %385 = vmatprep.subr.mxu0 0.0
      %386 = vmatpush2.msra.mxu0 0.0
      %387 = vmatprep.subr.mxu0 0.0
      %388 = vmatpush2.msra.mxu0 0.0
      %389 = vmatprep.subr.mxu0 0.0
      %390 = vmatpush2.msra.mxu0 0.0
      %391 = vmatprep.subr.mxu0 0.0
      %392 = vmatpush2.msra.mxu0 0.0
      %393 = vmatprep.subr.mxu0 0.0
      %394 = vmatpush2.msra.mxu0 0.0
      %395 = vmatprep.subr.mxu0 0.0
      %396 = vmatpush2.msra.mxu0 0.0
      %397 = vmatprep.subr.mxu0 0.0
      %398 = vmatpush2.msra.mxu0 0.0
      %399 = vmatprep.mubr.f32.mxu0 0.0
      %400 = vmatmul.mubr.f32.gmra.mxu0 %v263
      %v401 = vpop.f32.mrf.mxu0
      %v402 = vadd.f32 0.0, %v401
      %v403 = vpop.f32.mrf.mxu0
      %404 = vdwg.mxu0
      %405 = vmatprep.subr.mxu0 0.0
      %406 = vmatpush1.msra.mxu0 0.0
      %407 = vmatprep.subr.mxu0 0.0
      %408 = vmatpush1.msra.mxu0 0.0
      %409 = vmatprep.subr.mxu0 0.0
      %410 = vmatpush1.msra.mxu0 0.0
      %411 = vmatprep.subr.mxu0 0.0
      %412 = vmatpush1.msra.mxu0 0.0
      %413 = vmatprep.subr.mxu0 0.0
      %414 = vmatpush1.msra.mxu0 0.0
      %415 = vmatprep.subr.mxu0 0.0
      %416 = vmatpush1.msra.mxu0 0.0
      %417 = vmatprep.subr.mxu0 0.0
      %418 = vmatpush1.msra.mxu0 0.0
      %419 = vmatprep.subr.mxu0 0.0
      %420 = vmatpush1.msra.mxu0 0.0
      %421 = vmatprep.subr.mxu0 0.0
      %422 = vmatpush1.msra.mxu0 0.0
      %423 = vmatprep.subr.mxu0 0.0
      %424 = vmatpush1.msra.mxu0 0.0
      %425 = vmatprep.subr.mxu0 0.0
      %426 = vmatpush1.msra.mxu0 0.0
      %427 = vmatprep.subr.mxu0 0.0
      %428 = vmatpush1.msra.mxu0 0.0
      %429 = vmatprep.subr.mxu0 0.0
      %430 = vmatpush1.msra.mxu0 0.0
      %431 = vmatprep.subr.mxu0 0.0
      %432 = vmatpush1.msra.mxu0 0.0
      %433 = vmatprep.subr.mxu0 0.0
      %434 = vmatpush1.msra.mxu0 0.0
      %435 = vmatprep.subr.mxu0 0.0
      %436 = vmatpush1.msra.mxu0 %v255
      %437 = vmatprep.subr.mxu0 0.0
      %438 = vmatpush2.msra.mxu0 0.0
      %439 = vmatprep.subr.mxu0 0.0
      %440 = vmatpush2.msra.mxu0 0.0
      %441 = vmatprep.subr.mxu0 0.0
      %442 = vmatpush2.msra.mxu0 0.0
      %443 = vmatprep.subr.mxu0 0.0
      %444 = vmatpush2.msra.mxu0 0.0
      %445 = vmatprep.subr.mxu0 0.0
      %446 = vmatpush2.msra.mxu0 0.0
      %447 = vmatprep.subr.mxu0 0.0
      %448 = vmatpush2.msra.mxu0 0.0
      %449 = vmatprep.subr.mxu0 0.0
      %450 = vmatpush2.msra.mxu0 0.0
      %451 = vmatprep.subr.mxu0 0.0
      %452 = vmatpush2.msra.mxu0 0.0
      %453 = vmatprep.subr.mxu0 0.0
      %454 = vmatpush2.msra.mxu0 0.0
      %455 = vmatprep.subr.mxu0 0.0
      %456 = vmatpush2.msra.mxu0 0.0
      %457 = vmatprep.subr.mxu0 0.0
      %458 = vmatpush2.msra.mxu0 0.0
      %459 = vmatprep.subr.mxu0 0.0
      %460 = vmatpush2.msra.mxu0 0.0
      %461 = vmatprep.subr.mxu0 0.0
      %462 = vmatpush2.msra.mxu0 0.0
      %463 = vmatprep.subr.mxu0 0.0
      %464 = vmatpush2.msra.mxu0 0.0
      %465 = vmatprep.subr.mxu0 0.0
      %466 = vmatpush2.msra.mxu0 0.0
      %467 = vmatprep.subr.mxu0 0.0
      %468 = vmatpush2.msra.mxu0 0.0
      %469 = vmatprep.mubr.f32.mxu0 0.0
      %470 = vmatmul.mubr.f32.gmra.mxu0 %v263
      %v471 = vpop.f32.mrf.mxu0
      %v472 = vadd.f32 0.0, %v471
      %v473 = vpop.f32.mrf.mxu0
      %474 = vdwg.mxu0
      %475 = vmatprep.subr.mxu0 0.0
      %476 = vmatpush1.msra.mxu0 0.0
      %477 = vmatprep.subr.mxu0 0.0
      %478 = vmatpush1.msra.mxu0 0.0
      %479 = vmatprep.subr.mxu0 0.0
      %480 = vmatpush1.msra.mxu0 0.0
      %481 = vmatprep.subr.mxu0 0.0
      %482 = vmatpush1.msra.mxu0 0.0
      %483 = vmatprep.subr.mxu0 0.0
      %484 = vmatpush1.msra.mxu0 0.0
      %485 = vmatprep.subr.mxu0 0.0
      %486 = vmatpush1.msra.mxu0 0.0
      %487 = vmatprep.subr.mxu0 0.0
      %488 = vmatpush1.msra.mxu0 0.0
      %489 = vmatprep.subr.mxu0 0.0
      %490 = vmatpush1.msra.mxu0 0.0
      %491 = vmatprep.subr.mxu0 0.0
      %492 = vmatpush1.msra.mxu0 0.0
      %493 = vmatprep.subr.mxu0 0.0
      %494 = vmatpush1.msra.mxu0 0.0
      %495 = vmatprep.subr.mxu0 0.0
      %496 = vmatpush1.msra.mxu0 0.0
      %497 = vmatprep.subr.mxu0 0.0
      %498 = vmatpush1.msra.mxu0 0.0
      %499 = vmatprep.subr.mxu0 0.0
      %500 = vmatpush1.msra.mxu0 0.0
      %501 = vmatprep.subr.mxu0 0.0
      %502 = vmatpush1.msra.mxu0 0.0
      %503 = vmatprep.subr.mxu0 0.0
      %504 = vmatpush1.msra.mxu0 0.0
      %505 = vmatprep.subr.mxu0 0.0
      %506 = vmatpush1.msra.mxu0 %v256
      %507 = vmatprep.subr.mxu0 0.0
      %508 = vmatpush2.msra.mxu0 0.0
      %509 = vmatprep.subr.mxu0 0.0
      %510 = vmatpush2.msra.mxu0 0.0
      %511 = vmatprep.subr.mxu0 0.0
      %512 = vmatpush2.msra.mxu0 0.0
      %513 = vmatprep.subr.mxu0 0.0
      %514 = vmatpush2.msra.mxu0 0.0
      %515 = vmatprep.subr.mxu0 0.0
      %516 = vmatpush2.msra.mxu0 0.0
      %517 = vmatprep.subr.mxu0 0.0
      %518 = vmatpush2.msra.mxu0 0.0
      %519 = vmatprep.subr.mxu0 0.0
      %520 = vmatpush2.msra.mxu0 0.0
      %521 = vmatprep.subr.mxu0 0.0
      %522 = vmatpush2.msra.mxu0 0.0
      %523 = vmatprep.subr.mxu0 0.0
      %524 = vmatpush2.msra.mxu0 0.0
      %525 = vmatprep.subr.mxu0 0.0
      %526 = vmatpush2.msra.mxu0 0.0
      %527 = vmatprep.subr.mxu0 0.0
      %528 = vmatpush2.msra.mxu0 0.0
      %529 = vmatprep.subr.mxu0 0.0
      %530 = vmatpush2.msra.mxu0 0.0
      %531 = vmatprep.subr.mxu0 0.0
      %532 = vmatpush2.msra.mxu0 0.0
      %533 = vmatprep.subr.mxu0 0.0
      %534 = vmatpush2.msra.mxu0 0.0
      %535 = vmatprep.subr.mxu0 0.0
      %536 = vmatpush2.msra.mxu0 0.0
      %537 = vmatprep.subr.mxu0 0.0
      %538 = vmatpush2.msra.mxu0 0.0
      %539 = vmatprep.mubr.f32.mxu0 0.0
      %540 = vmatmul.mubr.f32.gmra.mxu0 %v263
      %v541 = vpop.f32.mrf.mxu0
      %v542 = vadd.f32 0.0, %v541
      %v543 = vpop.f32.mrf.mxu0
      %544 = vdwg.mxu0
      %545 = vmatprep.subr.mxu0 0.0
      %546 = vmatpush1.msra.mxu0 0.0
      %547 = vmatprep.subr.mxu0 0.0
      %548 = vmatpush1.msra.mxu0 0.0
      %549 = vmatprep.subr.mxu0 0.0
      %550 = vmatpush1.msra.mxu0 0.0
      %551 = vmatprep.subr.mxu0 0.0
      %552 = vmatpush1.msra.mxu0 0.0
      %553 = vmatprep.subr.mxu0 0.0
      %554 = vmatpush1.msra.mxu0 0.0
      %555 = vmatprep.subr.mxu0 0.0
      %556 = vmatpush1.msra.mxu0 0.0
      %557 = vmatprep.subr.mxu0 0.0
      %558 = vmatpush1.msra.mxu0 0.0
      %559 = vmatprep.subr.mxu0 0.0
      %560 = vmatpush1.msra.mxu0 0.0
      %561 = vmatprep.subr.mxu0 0.0
      %562 = vmatpush1.msra.mxu0 0.0
      %563 = vmatprep.subr.mxu0 0.0
      %564 = vmatpush1.msra.mxu0 0.0
      %565 = vmatprep.subr.mxu0 0.0
      %566 = vmatpush1.msra.mxu0 0.0
      %567 = vmatprep.subr.mxu0 0.0
      %568 = vmatpush1.msra.mxu0 0.0
      %569 = vmatprep.subr.mxu0 0.0
      %570 = vmatpush1.msra.mxu0 0.0
      %571 = vmatprep.subr.mxu0 0.0
      %572 = vmatpush1.msra.mxu0 0.0
      %573 = vmatprep.subr.mxu0 0.0
      %574 = vmatpush1.msra.mxu0 0.0
      %575 = vmatprep.subr.mxu0 0.0
      %576 = vmatpush1.msra.mxu0 %v257
      %577 = vmatprep.subr.mxu0 0.0
      %578 = vmatpush2.msra.mxu0 0.0
      %579 = vmatprep.subr.mxu0 0.0
      %580 = vmatpush2.msra.mxu0 0.0
      %581 = vmatprep.subr.mxu0 0.0
      %582 = vmatpush2.msra.mxu0 0.0
      %583 = vmatprep.subr.mxu0 0.0
      %584 = vmatpush2.msra.mxu0 0.0
      %585 = vmatprep.subr.mxu0 0.0
      %586 = vmatpush2.msra.mxu0 0.0
      %587 = vmatprep.subr.mxu0 0.0
      %588 = vmatpush2.msra.mxu0 0.0
      %589 = vmatprep.subr.mxu0 0.0
      %590 = vmatpush2.msra.mxu0 0.0
      %591 = vmatprep.subr.mxu0 0.0
      %592 = vmatpush2.msra.mxu0 0.0
      %593 = vmatprep.subr.mxu0 0.0
      %594 = vmatpush2.msra.mxu0 0.0
      %595 = vmatprep.subr.mxu0 0.0
      %596 = vmatpush2.msra.mxu0 0.0
      %597 = vmatprep.subr.mxu0 0.0
      %598 = vmatpush2.msra.mxu0 0.0
      %599 = vmatprep.subr.mxu0 0.0
      %600 = vmatpush2.msra.mxu0 0.0
      %601 = vmatprep.subr.mxu0 0.0
      %602 = vmatpush2.msra.mxu0 0.0
      %603 = vmatprep.subr.mxu0 0.0
      %604 = vmatpush2.msra.mxu0 0.0
      %605 = vmatprep.subr.mxu0 0.0
      %606 = vmatpush2.msra.mxu0 0.0
      %607 = vmatprep.subr.mxu0 0.0
      %608 = vmatpush2.msra.mxu0 0.0
      %609 = vmatprep.mubr.f32.mxu0 0.0
      %610 = vmatmul.mubr.f32.gmra.mxu0 %v263
      %v611 = vpop.f32.mrf.mxu0
      %v612 = vadd.f32 0.0, %v611
      %v613 = vpop.f32.mrf.mxu0
      %614 = vdwg.mxu0
      %615 = vmatprep.subr.mxu0 0.0
      %616 = vmatpush1.msra.mxu0 0.0
      %617 = vmatprep.subr.mxu0 0.0
      %618 = vmatpush1.msra.mxu0 0.0
      %619 = vmatprep.subr.mxu0 0.0
      %620 = vmatpush1.msra.mxu0 0.0
      %621 = vmatprep.subr.mxu0 0.0
      %622 = vmatpush1.msra.mxu0 0.0
      %623 = vmatprep.subr.mxu0 0.0
      %624 = vmatpush1.msra.mxu0 0.0
      %625 = vmatprep.subr.mxu0 0.0
      %626 = vmatpush1.msra.mxu0 0.0
      %627 = vmatprep.subr.mxu0 0.0
      %628 = vmatpush1.msra.mxu0 0.0
      %629 = vmatprep.subr.mxu0 0.0
      %630 = vmatpush1.msra.mxu0 0.0
      %631 = vmatprep.subr.mxu0 0.0
      %632 = vmatpush1.msra.mxu0 0.0
      %633 = vmatprep.subr.mxu0 0.0
      %634 = vmatpush1.msra.mxu0 0.0
      %635 = vmatprep.subr.mxu0 0.0
      %636 = vmatpush1.msra.mxu0 0.0
      %637 = vmatprep.subr.mxu0 0.0
      %638 = vmatpush1.msra.mxu0 0.0
      %639 = vmatprep.subr.mxu0 0.0
      %640 = vmatpush1.msra.mxu0 0.0
      %641 = vmatprep.subr.mxu0 0.0
      %642 = vmatpush1.msra.mxu0 0.0
      %643 = vmatprep.subr.mxu0 0.0
      %644 = vmatpush1.msra.mxu0 0.0
      %645 = vmatprep.subr.mxu0 0.0
      %646 = vmatpush1.msra.mxu0 %v258
      %647 = vmatprep.subr.mxu0 0.0
      %648 = vmatpush2.msra.mxu0 0.0
      %649 = vmatprep.subr.mxu0 0.0
      %650 = vmatpush2.msra.mxu0 0.0
      %651 = vmatprep.subr.mxu0 0.0
      %652 = vmatpush2.msra.mxu0 0.0
      %653 = vmatprep.subr.mxu0 0.0
      %654 = vmatpush2.msra.mxu0 0.0
      %655 = vmatprep.subr.mxu0 0.0
      %656 = vmatpush2.msra.mxu0 0.0
      %657 = vmatprep.subr.mxu0 0.0
      %658 = vmatpush2.msra.mxu0 0.0
      %659 = vmatprep.subr.mxu0 0.0
      %660 = vmatpush2.msra.mxu0 0.0
      %661 = vmatprep.subr.mxu0 0.0
      %662 = vmatpush2.msra.mxu0 0.0
      %663 = vmatprep.subr.mxu0 0.0
      %664 = vmatpush2.msra.mxu0 0.0
      %665 = vmatprep.subr.mxu0 0.0
      %666 = vmatpush2.msra.mxu0 0.0
      %667 = vmatprep.subr.mxu0 0.0
      %668 = vmatpush2.msra.mxu0 0.0
      %669 = vmatprep.subr.mxu0 0.0
      %670 = vmatpush2.msra.mxu0 0.0
      %671 = vmatprep.subr.mxu0 0.0
      %672 = vmatpush2.msra.mxu0 0.0
      %673 = vmatprep.subr.mxu0 0.0
      %674 = vmatpush2.msra.mxu0 0.0
      %675 = vmatprep.subr.mxu0 0.0
      %676 = vmatpush2.msra.mxu0 0.0
      %677 = vmatprep.subr.mxu0 0.0
      %678 = vmatpush2.msra.mxu0 0.0
      %679 = vmatprep.mubr.f32.mxu0 0.0
      %680 = vmatmul.mubr.f32.gmra.mxu0 %v263
      %v681 = vpop.f32.mrf.mxu0
      %v682 = vadd.f32 0.0, %v681
      %v683 = vpop.f32.mrf.mxu0
      %684 = vdwg.mxu0
      %685 = vmatprep.subr.mxu0 0.0
      %686 = vmatpush1.msra.mxu0 0.0
      %687 = vmatprep.subr.mxu0 0.0
      %688 = vmatpush1.msra.mxu0 0.0
      %689 = vmatprep.subr.mxu0 0.0
      %690 = vmatpush1.msra.mxu0 0.0
      %691 = vmatprep.subr.mxu0 0.0
      %692 = vmatpush1.msra.mxu0 0.0
      %693 = vmatprep.subr.mxu0 0.0
      %694 = vmatpush1.msra.mxu0 0.0
      %695 = vmatprep.subr.mxu0 0.0
      %696 = vmatpush1.msra.mxu0 0.0
      %697 = vmatprep.subr.mxu0 0.0
      %698 = vmatpush1.msra.mxu0 0.0
      %699 = vmatprep.subr.mxu0 0.0
      %700 = vmatpush1.msra.mxu0 0.0
      %701 = vmatprep.subr.mxu0 0.0
      %702 = vmatpush1.msra.mxu0 0.0
      %703 = vmatprep.subr.mxu0 0.0
      %704 = vmatpush1.msra.mxu0 0.0
      %705 = vmatprep.subr.mxu0 0.0
      %706 = vmatpush1.msra.mxu0 0.0
      %707 = vmatprep.subr.mxu0 0.0
      %708 = vmatpush1.msra.mxu0 0.0
      %709 = vmatprep.subr.mxu0 0.0
      %710 = vmatpush1.msra.mxu0 0.0
      %711 = vmatprep.subr.mxu0 0.0
      %712 = vmatpush1.msra.mxu0 0.0
      %713 = vmatprep.subr.mxu0 0.0
      %714 = vmatpush1.msra.mxu0 0.0
      %715 = vmatprep.subr.mxu0 0.0
      %716 = vmatpush1.msra.mxu0 %v259
      %717 = vmatprep.subr.mxu0 0.0
      %718 = vmatpush2.msra.mxu0 0.0
      %719 = vmatprep.subr.mxu0 0.0
      %720 = vmatpush2.msra.mxu0 0.0
      %721 = vmatprep.subr.mxu0 0.0
      %722 = vmatpush2.msra.mxu0 0.0
      %723 = vmatprep.subr.mxu0 0.0
      %724 = vmatpush2.msra.mxu0 0.0
      %725 = vmatprep.subr.mxu0 0.0
      %726 = vmatpush2.msra.mxu0 0.0
      %727 = vmatprep.subr.mxu0 0.0
      %728 = vmatpush2.msra.mxu0 0.0
      %729 = vmatprep.subr.mxu0 0.0
      %730 = vmatpush2.msra.mxu0 0.0
      %731 = vmatprep.subr.mxu0 0.0
      %732 = vmatpush2.msra.mxu0 0.0
      %733 = vmatprep.subr.mxu0 0.0
      %734 = vmatpush2.msra.mxu0 0.0
      %735 = vmatprep.subr.mxu0 0.0
      %736 = vmatpush2.msra.mxu0 0.0
      %737 = vmatprep.subr.mxu0 0.0
      %738 = vmatpush2.msra.mxu0 0.0
      %739 = vmatprep.subr.mxu0 0.0
      %740 = vmatpush2.msra.mxu0 0.0
      %741 = vmatprep.subr.mxu0 0.0
      %742 = vmatpush2.msra.mxu0 0.0
      %743 = vmatprep.subr.mxu0 0.0
      %744 = vmatpush2.msra.mxu0 0.0
      %745 = vmatprep.subr.mxu0 0.0
      %746 = vmatpush2.msra.mxu0 0.0
      %747 = vmatprep.subr.mxu0 0.0
      %748 = vmatpush2.msra.mxu0 0.0
      %749 = vmatprep.mubr.f32.mxu0 0.0
      %750 = vmatmul.mubr.f32.gmra.mxu0 %v263
      %v751 = vpop.f32.mrf.mxu0
      %v752 = vadd.f32 0.0, %v751
      %v753 = vpop.f32.mrf.mxu0
      %754 = vdwg.mxu0
      %755 = vmatprep.subr.mxu0 0.0
      %756 = vmatpush1.msra.mxu0 0.0
      %757 = vmatprep.subr.mxu0 0.0
      %758 = vmatpush1.msra.mxu0 0.0
      %759 = vmatprep.subr.mxu0 0.0
      %760 = vmatpush1.msra.mxu0 0.0
      %761 = vmatprep.subr.mxu0 0.0
      %762 = vmatpush1.msra.mxu0 0.0
      %763 = vmatprep.subr.mxu0 0.0
      %764 = vmatpush1.msra.mxu0 0.0
      %765 = vmatprep.subr.mxu0 0.0
      %766 = vmatpush1.msra.mxu0 0.0
      %767 = vmatprep.subr.mxu0 0.0
      %768 = vmatpush1.msra.mxu0 0.0
      %769 = vmatprep.subr.mxu0 0.0
      %770 = vmatpush1.msra.mxu0 0.0
      %771 = vmatprep.subr.mxu0 0.0
      %772 = vmatpush1.msra.mxu0 0.0
      %773 = vmatprep.subr.mxu0 0.0
      %774 = vmatpush1.msra.mxu0 0.0
      %775 = vmatprep.subr.mxu0 0.0
      %776 = vmatpush1.msra.mxu0 0.0
      %777 = vmatprep.subr.mxu0 0.0
      %778 = vmatpush1.msra.mxu0 0.0
      %779 = vmatprep.subr.mxu0 0.0
      %780 = vmatpush1.msra.mxu0 0.0
      %781 = vmatprep.subr.mxu0 0.0
      %782 = vmatpush1.msra.mxu0 0.0
      %783 = vmatprep.subr.mxu0 0.0
      %784 = vmatpush1.msra.mxu0 0.0
      %785 = vmatprep.subr.mxu0 0.0
      %786 = vmatpush1.msra.mxu0 %v260
      %787 = vmatprep.subr.mxu0 0.0
      %788 = vmatpush2.msra.mxu0 0.0
      %789 = vmatprep.subr.mxu0 0.0
      %790 = vmatpush2.msra.mxu0 0.0
      %791 = vmatprep.subr.mxu0 0.0
      %792 = vmatpush2.msra.mxu0 0.0
      %793 = vmatprep.subr.mxu0 0.0
      %794 = vmatpush2.msra.mxu0 0.0
      %795 = vmatprep.subr.mxu0 0.0
      %796 = vmatpush2.msra.mxu0 0.0
      %797 = vmatprep.subr.mxu0 0.0
      %798 = vmatpush2.msra.mxu0 0.0
      %799 = vmatprep.subr.mxu0 0.0
      %800 = vmatpush2.msra.mxu0 0.0
      %801 = vmatprep.subr.mxu0 0.0
      %802 = vmatpush2.msra.mxu0 0.0
      %803 = vmatprep.subr.mxu0 0.0
      %804 = vmatpush2.msra.mxu0 0.0
      %805 = vmatprep.subr.mxu0 0.0
      %806 = vmatpush2.msra.mxu0 0.0
      %807 = vmatprep.subr.mxu0 0.0
      %808 = vmatpush2.msra.mxu0 0.0
      %809 = vmatprep.subr.mxu0 0.0
      %810 = vmatpush2.msra.mxu0 0.0
      %811 = vmatprep.subr.mxu0 0.0
      %812 = vmatpush2.msra.mxu0 0.0
      %813 = vmatprep.subr.mxu0 0.0
      %814 = vmatpush2.msra.mxu0 0.0
      %815 = vmatprep.subr.mxu0 0.0
      %816 = vmatpush2.msra.mxu0 0.0
      %817 = vmatprep.subr.mxu0 0.0
      %818 = vmatpush2.msra.mxu0 0.0
      %819 = vmatprep.mubr.f32.mxu0 0.0
      %820 = vmatmul.mubr.f32.gmra.mxu0 %v263
      %v821 = vpop.f32.mrf.mxu0
      %v822 = vadd.f32 0.0, %v821
      %v823 = vpop.f32.mrf.mxu0
      %824 = vdwg.mxu0
      %825 = vst [vmem:[#allocation2] sm:$0xff] 0.0
      %vm826 = vcmask 48128
      %827 = vst.msk [vmem:[#allocation2 + $0x8] sm:$0xff] %vm826, 0.0
      %828 = vst [vmem:[#allocation2 + $0x10] sm:$0xff] 0.0
      %829 = vst.msk [vmem:[#allocation2 + $0x18] sm:$0xff] %vm826, 0.0
      %830 = vst [vmem:[#allocation2 + $0x20] sm:$0xff] 0.0
      %831 = vst.msk [vmem:[#allocation2 + $0x28] sm:$0xff] %vm826, 0.0
      %832 = vst [vmem:[#allocation2 + $0x30] sm:$0xff] 0.0
      %833 = vst.msk [vmem:[#allocation2 + $0x38] sm:$0xff] %vm826, 0.0
      %834 = vst [vmem:[#allocation2 + $0x40] sm:$0xff] 0.0
      %835 = vst.msk [vmem:[#allocation2 + $0x48] sm:$0xff] %vm826, 0.0
      %836 = vst [vmem:[#allocation2 + $0x50] sm:$0xff] 0.0
      %837 = vst.msk [vmem:[#allocation2 + $0x58] sm:$0xff] %vm826, 0.0
      %838 = vst [vmem:[#allocation2 + $0x60] sm:$0xff] 0.0
      %839 = vst.msk [vmem:[#allocation2 + $0x68] sm:$0xff] %vm826, 0.0
      %840 = vst [vmem:[#allocation2 + $0x70] sm:$0xff] 0.0
      %841 = vst.msk [vmem:[#allocation2 + $0x78] sm:$0xff] %vm826, 0.0
      %850 = vrot.lane.b32.xlu0 %v332, 6
      %v851 = vpop.permute.xlu0 %850
      %852 = vrot.lane.b32.xlu0 %v402, 6
      %v853 = vpop.permute.xlu0 %852
      %854 = vrot.lane.b32.xlu0 %v472, 6
      %v855 = vpop.permute.xlu0 %854
      %856 = vrot.lane.b32.xlu0 %v542, 6
      %v857 = vpop.permute.xlu0 %856
      %858 = vrot.lane.b32.xlu0 %v612, 6
      %v859 = vpop.permute.xlu0 %858
      %860 = vrot.lane.b32.xlu0 %v682, 6
      %v861 = vpop.permute.xlu0 %860
      %862 = vrot.lane.b32.xlu0 %v752, 6
      %v863 = vpop.permute.xlu0 %862
      %864 = vrot.lane.b32.xlu0 %v822, 6
      %v865 = vpop.permute.xlu0 %864
      %vm874 = vcmask 1047600
      %875 = vst.msk [vmem:[#allocation2] sm:$0xff] %vm874, %v851
      %876 = vst.msk [vmem:[#allocation2 + $0x10] sm:$0xff] %vm874, %v853
      %877 = vst.msk [vmem:[#allocation2 + $0x20] sm:$0xff] %vm874, %v855
      %878 = vst.msk [vmem:[#allocation2 + $0x30] sm:$0xff] %vm874, %v857
      %879 = vst.msk [vmem:[#allocation2 + $0x40] sm:$0xff] %vm874, %v859
      %880 = vst.msk [vmem:[#allocation2 + $0x50] sm:$0xff] %vm874, %v861
      %881 = vst.msk [vmem:[#allocation2 + $0x60] sm:$0xff] %vm874, %v863
      %882 = vst.msk [vmem:[#allocation2 + $0x70] sm:$0xff] %vm874, %v865
      %v883 = vld [vmem:[%s2] sm:$0xff]
      %v884 = vld [vmem:[%s2 + $0x8] sm:$0xff]
      %v885 = vld [vmem:[%s2 + $0x10] sm:$0xff]
      %v886 = vld [vmem:[%s2 + $0x18] sm:$0xff]
      %v887 = vld [vmem:[%s2 + $0x20] sm:$0xff]
      %v888 = vld [vmem:[%s2 + $0x28] sm:$0xff]
      %v889 = vld [vmem:[%s2 + $0x30] sm:$0xff]
      %v890 = vld [vmem:[%s2 + $0x38] sm:$0xff]
      %v891 = vld [vmem:[%s2 + $0x40] sm:$0xff]
      %v892 = vld [vmem:[%s2 + $0x48] sm:$0xff]
      %v893 = vld [vmem:[%s2 + $0x50] sm:$0xff]
      %v894 = vld [vmem:[%s2 + $0x58] sm:$0xff]
      %v895 = vld [vmem:[#allocation2] sm:$0xff]
      %v896 = vld [vmem:[#allocation2 + $0x8] sm:$0xff]
      %v897 = vld [vmem:[#allocation2 + $0x10] sm:$0xff]
      %v898 = vld [vmem:[#allocation2 + $0x18] sm:$0xff]
      %v899 = vld [vmem:[#allocation2 + $0x20] sm:$0xff]
      %v900 = vld [vmem:[#allocation2 + $0x28] sm:$0xff]
      %v901 = vld [vmem:[#allocation2 + $0x30] sm:$0xff]
      %v902 = vld [vmem:[#allocation2 + $0x38] sm:$0xff]
      %v903 = vld [vmem:[#allocation2 + $0x40] sm:$0xff]
      %v904 = vld [vmem:[#allocation2 + $0x48] sm:$0xff]
      %v905 = vld [vmem:[#allocation2 + $0x50] sm:$0xff]
      %v906 = vld [vmem:[#allocation2 + $0x58] sm:$0xff]
      %v907 = vld [vmem:[#allocation2 + $0x60] sm:$0xff]
      %v908 = vld [vmem:[#allocation2 + $0x68] sm:$0xff]
      %v909 = vld [vmem:[#allocation2 + $0x70] sm:$0xff]
      %v910 = vld [vmem:[#allocation2 + $0x78] sm:$0xff]
      %v912 = vsel %vm261, %v883, 0
      %v915 = vsel %vm261, %v884, 0
      %v918 = vsel %vm261, %v885, 0
      %v921 = vsel %vm261, %v886, 0
      %v924 = vsel %vm261, %v887, 0
      %v927 = vsel %vm261, %v888, 0
      %v930 = vsel %vm261, %v889, 0
      %v933 = vsel %vm261, %v890, 0
      %v936 = vsel %vm261, %v891, 0
      %v939 = vsel %vm261, %v892, 0
      %v942 = vsel %vm261, %v893, 0
      %v945 = vsel %vm261, %v894, 0
      %947 = vmatprep.subr.mxu0 0.0
      %948 = vmatpush1.msra.mxu0 0.0
      %949 = vmatprep.subr.mxu0 0.0
      %950 = vmatpush1.msra.mxu0 0.0
      %951 = vmatprep.subr.mxu0 0.0
      %952 = vmatpush1.msra.mxu0 0.0
      %953 = vmatprep.subr.mxu0 0.0
      %954 = vmatpush1.msra.mxu0 0.0
      %955 = vmatprep.subr.mxu0 0.0
      %956 = vmatpush1.msra.mxu0 0.0
      %957 = vmatprep.subr.mxu0 0.0
      %958 = vmatpush1.msra.mxu0 0.0
      %959 = vmatprep.subr.mxu0 0.0
      %960 = vmatpush1.msra.mxu0 0.0
      %961 = vmatprep.subr.mxu0 0.0
      %962 = vmatpush1.msra.mxu0 0.0
      %963 = vmatprep.subr.mxu0 0.0
      %964 = vmatpush1.msra.mxu0 0.0
      %965 = vmatprep.subr.mxu0 0.0
      %966 = vmatpush1.msra.mxu0 0.0
      %967 = vmatprep.subr.mxu0 0.0
      %968 = vmatpush1.msra.mxu0 0.0
      %969 = vmatprep.subr.mxu0 0.0
      %970 = vmatpush1.msra.mxu0 0.0
      %971 = vmatprep.subr.mxu0 0.0
      %972 = vmatpush1.msra.mxu0 0.0
      %973 = vmatprep.subr.mxu0 0.0
      %974 = vmatpush1.msra.mxu0 0.0
      %975 = vmatprep.subr.mxu0 0.0
      %976 = vmatpush1.msra.mxu0 0.0
      %977 = vmatprep.subr.mxu0 %v896
      %978 = vmatpush1.msra.mxu0 %v895
      %979 = vmatprep.subr.mxu0 0.0
      %980 = vmatpush2.msra.mxu0 0.0
      %981 = vmatprep.subr.mxu0 0.0
      %982 = vmatpush2.msra.mxu0 0.0
      %983 = vmatprep.subr.mxu0 0.0
      %984 = vmatpush2.msra.mxu0 0.0
      %985 = vmatprep.subr.mxu0 0.0
      %986 = vmatpush2.msra.mxu0 0.0
      %987 = vmatprep.subr.mxu0 0.0
      %988 = vmatpush2.msra.mxu0 0.0
      %989 = vmatprep.subr.mxu0 0.0
      %990 = vmatpush2.msra.mxu0 0.0
      %991 = vmatprep.subr.mxu0 0.0
      %992 = vmatpush2.msra.mxu0 0.0
      %993 = vmatprep.subr.mxu0 0.0
      %994 = vmatpush2.msra.mxu0 0.0
      %995 = vmatprep.subr.mxu0 0.0
      %996 = vmatpush2.msra.mxu0 0.0
      %997 = vmatprep.subr.mxu0 0.0
      %998 = vmatpush2.msra.mxu0 0.0
      %999 = vmatprep.subr.mxu0 0.0
      %1000 = vmatpush2.msra.mxu0 0.0
      %1001 = vmatprep.subr.mxu0 0.0
      %1002 = vmatpush2.msra.mxu0 0.0
      %1003 = vmatprep.subr.mxu0 0.0
      %1004 = vmatpush2.msra.mxu0 0.0
      %1005 = vmatprep.subr.mxu0 0.0
      %1006 = vmatpush2.msra.mxu0 0.0
      %1007 = vmatprep.subr.mxu0 0.0
      %1008 = vmatpush2.msra.mxu0 0.0
      %1009 = vmatprep.subr.mxu0 0.0
      %1010 = vmatpush2.msra.mxu0 0.0
      %1011 = vmatprep.mubr.f32.mxu0 0.0
      %1012 = vmatmul.mubr.f32.gmra.mxu0 %v912
      %v1013 = vpop.f32.mrf.mxu0
      %v1014 = vadd.f32 0.0, %v1013
      %v1015 = vpop.f32.mrf.mxu0
      %1016 = vmatprep.mubr.f32.mxu0 0.0
      %1017 = vmatmul.mubr.f32.gmra.mxu0 %v915
      %v1018 = vpop.f32.mrf.mxu0
      %v1019 = vadd.f32 0.0, %v1018
      %v1020 = vpop.f32.mrf.mxu0
      %1021 = vmatprep.mubr.f32.mxu0 0.0
      %1022 = vmatmul.mubr.f32.gmra.mxu0 %v918
      %v1023 = vpop.f32.mrf.mxu0
      %v1024 = vadd.f32 0.0, %v1023
      %v1025 = vpop.f32.mrf.mxu0
      %1026 = vmatprep.mubr.f32.mxu0 0.0
      %1027 = vmatmul.mubr.f32.gmra.mxu0 %v921
      %v1028 = vpop.f32.mrf.mxu0
      %v1029 = vadd.f32 0.0, %v1028
      %v1030 = vpop.f32.mrf.mxu0
      %1031 = vmatprep.mubr.f32.mxu0 0.0
      %1032 = vmatmul.mubr.f32.gmra.mxu0 %v924
      %v1033 = vpop.f32.mrf.mxu0
      %v1034 = vadd.f32 0.0, %v1033
      %v1035 = vpop.f32.mrf.mxu0
      %1036 = vmatprep.mubr.f32.mxu0 0.0
      %1037 = vmatmul.mubr.f32.gmra.mxu0 %v927
      %v1038 = vpop.f32.mrf.mxu0
      %v1039 = vadd.f32 0.0, %v1038
      %v1040 = vpop.f32.mrf.mxu0
      %1041 = vmatprep.mubr.f32.mxu0 0.0
      %1042 = vmatmul.mubr.f32.gmra.mxu0 %v930
      %v1043 = vpop.f32.mrf.mxu0
      %v1044 = vadd.f32 0.0, %v1043
      %v1045 = vpop.f32.mrf.mxu0
      %v1046 = vadd.f32 0.0, %v1045
      %1047 = vmatprep.mubr.f32.mxu0 0.0
      %1048 = vmatmul.mubr.f32.gmra.mxu0 %v933
      %v1049 = vpop.f32.mrf.mxu0
      %v1050 = vadd.f32 0.0, %v1049
      %v1051 = vpop.f32.mrf.mxu0
      %v1052 = vadd.f32 0.0, %v1051
      %1053 = vmatprep.mubr.f32.mxu0 0.0
      %1054 = vmatmul.mubr.f32.gmra.mxu0 %v936
      %v1055 = vpop.f32.mrf.mxu0
      %v1056 = vadd.f32 0.0, %v1055
      %v1057 = vpop.f32.mrf.mxu0
      %v1058 = vadd.f32 0.0, %v1057
      %1059 = vmatprep.mubr.f32.mxu0 0.0
      %1060 = vmatmul.mubr.f32.gmra.mxu0 %v939
      %v1061 = vpop.f32.mrf.mxu0
      %v1062 = vadd.f32 0.0, %v1061
      %v1063 = vpop.f32.mrf.mxu0
      %v1064 = vadd.f32 0.0, %v1063
      %1065 = vmatprep.mubr.f32.mxu0 0.0
      %1066 = vmatmul.mubr.f32.gmra.mxu0 %v942
      %v1067 = vpop.f32.mrf.mxu0
      %v1068 = vadd.f32 0.0, %v1067
      %v1069 = vpop.f32.mrf.mxu0
      %v1070 = vadd.f32 0.0, %v1069
      %1071 = vmatprep.mubr.f32.mxu0 0.0
      %1072 = vmatmul.mubr.f32.gmra.mxu0 %v945
      %v1073 = vpop.f32.mrf.mxu0
      %v1074 = vadd.f32 0.0, %v1073
      %v1075 = vpop.f32.mrf.mxu0
      %v1076 = vadd.f32 0.0, %v1075
      %1077 = vdwg.mxu0
      %1078 = vmatprep.subr.mxu0 0.0
      %1079 = vmatpush1.msra.mxu0 0.0
      %1080 = vmatprep.subr.mxu0 0.0
      %1081 = vmatpush1.msra.mxu0 0.0
      %1082 = vmatprep.subr.mxu0 0.0
      %1083 = vmatpush1.msra.mxu0 0.0
      %1084 = vmatprep.subr.mxu0 0.0
      %1085 = vmatpush1.msra.mxu0 0.0
      %1086 = vmatprep.subr.mxu0 0.0
      %1087 = vmatpush1.msra.mxu0 0.0
      %1088 = vmatprep.subr.mxu0 0.0
      %1089 = vmatpush1.msra.mxu0 0.0
      %1090 = vmatprep.subr.mxu0 0.0
      %1091 = vmatpush1.msra.mxu0 0.0
      %1092 = vmatprep.subr.mxu0 0.0
      %1093 = vmatpush1.msra.mxu0 0.0
      %1094 = vmatprep.subr.mxu0 0.0
      %1095 = vmatpush1.msra.mxu0 0.0
      %1096 = vmatprep.subr.mxu0 0.0
      %1097 = vmatpush1.msra.mxu0 0.0
      %1098 = vmatprep.subr.mxu0 0.0
      %1099 = vmatpush1.msra.mxu0 0.0
      %1100 = vmatprep.subr.mxu0 0.0
      %1101 = vmatpush1.msra.mxu0 0.0
      %1102 = vmatprep.subr.mxu0 0.0
      %1103 = vmatpush1.msra.mxu0 0.0
      %1104 = vmatprep.subr.mxu0 0.0
      %1105 = vmatpush1.msra.mxu0 0.0
      %1106 = vmatprep.subr.mxu0 0.0
      %1107 = vmatpush1.msra.mxu0 0.0
      %1108 = vmatprep.subr.mxu0 %v898
      %1109 = vmatpush1.msra.mxu0 %v897
      %1110 = vmatprep.subr.mxu0 0.0
      %1111 = vmatpush2.msra.mxu0 0.0
      %1112 = vmatprep.subr.mxu0 0.0
      %1113 = vmatpush2.msra.mxu0 0.0
      %1114 = vmatprep.subr.mxu0 0.0
      %1115 = vmatpush2.msra.mxu0 0.0
      %1116 = vmatprep.subr.mxu0 0.0
      %1117 = vmatpush2.msra.mxu0 0.0
      %1118 = vmatprep.subr.mxu0 0.0
      %1119 = vmatpush2.msra.mxu0 0.0
      %1120 = vmatprep.subr.mxu0 0.0
      %1121 = vmatpush2.msra.mxu0 0.0
      %1122 = vmatprep.subr.mxu0 0.0
      %1123 = vmatpush2.msra.mxu0 0.0
      %1124 = vmatprep.subr.mxu0 0.0
      %1125 = vmatpush2.msra.mxu0 0.0
      %1126 = vmatprep.subr.mxu0 0.0
      %1127 = vmatpush2.msra.mxu0 0.0
      %1128 = vmatprep.subr.mxu0 0.0
      %1129 = vmatpush2.msra.mxu0 0.0
      %1130 = vmatprep.subr.mxu0 0.0
      %1131 = vmatpush2.msra.mxu0 0.0
      %1132 = vmatprep.subr.mxu0 0.0
      %1133 = vmatpush2.msra.mxu0 0.0
      %1134 = vmatprep.subr.mxu0 0.0
      %1135 = vmatpush2.msra.mxu0 0.0
      %1136 = vmatprep.subr.mxu0 0.0
      %1137 = vmatpush2.msra.mxu0 0.0
      %1138 = vmatprep.subr.mxu0 0.0
      %1139 = vmatpush2.msra.mxu0 0.0
      %1140 = vmatprep.subr.mxu0 0.0
      %1141 = vmatpush2.msra.mxu0 0.0
      %1142 = vmatprep.mubr.f32.mxu0 0.0
      %1143 = vmatmul.mubr.f32.gmra.mxu0 %v912
      %v1144 = vpop.f32.mrf.mxu0
      %v1145 = vadd.f32 0.0, %v1144
      %v1146 = vpop.f32.mrf.mxu0
      %1147 = vmatprep.mubr.f32.mxu0 0.0
      %1148 = vmatmul.mubr.f32.gmra.mxu0 %v915
      %v1149 = vpop.f32.mrf.mxu0
      %v1150 = vadd.f32 0.0, %v1149
      %v1151 = vpop.f32.mrf.mxu0
      %1152 = vmatprep.mubr.f32.mxu0 0.0
      %1153 = vmatmul.mubr.f32.gmra.mxu0 %v918
      %v1154 = vpop.f32.mrf.mxu0
      %v1155 = vadd.f32 0.0, %v1154
      %v1156 = vpop.f32.mrf.mxu0
      %1157 = vmatprep.mubr.f32.mxu0 0.0
      %1158 = vmatmul.mubr.f32.gmra.mxu0 %v921
      %v1159 = vpop.f32.mrf.mxu0
      %v1160 = vadd.f32 0.0, %v1159
      %v1161 = vpop.f32.mrf.mxu0
      %1162 = vmatprep.mubr.f32.mxu0 0.0
      %1163 = vmatmul.mubr.f32.gmra.mxu0 %v924
      %v1164 = vpop.f32.mrf.mxu0
      %v1165 = vadd.f32 0.0, %v1164
      %v1166 = vpop.f32.mrf.mxu0
      %1167 = vmatprep.mubr.f32.mxu0 0.0
      %1168 = vmatmul.mubr.f32.gmra.mxu0 %v927
      %v1169 = vpop.f32.mrf.mxu0
      %v1170 = vadd.f32 0.0, %v1169
      %v1171 = vpop.f32.mrf.mxu0
      %1172 = vmatprep.mubr.f32.mxu0 0.0
      %1173 = vmatmul.mubr.f32.gmra.mxu0 %v930
      %v1174 = vpop.f32.mrf.mxu0
      %v1175 = vadd.f32 0.0, %v1174
      %v1176 = vpop.f32.mrf.mxu0
      %v1177 = vadd.f32 0.0, %v1176
      %1178 = vmatprep.mubr.f32.mxu0 0.0
      %1179 = vmatmul.mubr.f32.gmra.mxu0 %v933
      %v1180 = vpop.f32.mrf.mxu0
      %v1181 = vadd.f32 0.0, %v1180
      %v1182 = vpop.f32.mrf.mxu0
      %v1183 = vadd.f32 0.0, %v1182
      %1184 = vmatprep.mubr.f32.mxu0 0.0
      %1185 = vmatmul.mubr.f32.gmra.mxu0 %v936
      %v1186 = vpop.f32.mrf.mxu0
      %v1187 = vadd.f32 0.0, %v1186
      %v1188 = vpop.f32.mrf.mxu0
      %v1189 = vadd.f32 0.0, %v1188
      %1190 = vmatprep.mubr.f32.mxu0 0.0
      %1191 = vmatmul.mubr.f32.gmra.mxu0 %v939
      %v1192 = vpop.f32.mrf.mxu0
      %v1193 = vadd.f32 0.0, %v1192
      %v1194 = vpop.f32.mrf.mxu0
      %v1195 = vadd.f32 0.0, %v1194
      %1196 = vmatprep.mubr.f32.mxu0 0.0
      %1197 = vmatmul.mubr.f32.gmra.mxu0 %v942
      %v1198 = vpop.f32.mrf.mxu0
      %v1199 = vadd.f32 0.0, %v1198
      %v1200 = vpop.f32.mrf.mxu0
      %v1201 = vadd.f32 0.0, %v1200
      %1202 = vmatprep.mubr.f32.mxu0 0.0
      %1203 = vmatmul.mubr.f32.gmra.mxu0 %v945
      %v1204 = vpop.f32.mrf.mxu0
      %v1205 = vadd.f32 0.0, %v1204
      %v1206 = vpop.f32.mrf.mxu0
      %v1207 = vadd.f32 0.0, %v1206
      %1208 = vdwg.mxu0
      %1209 = vmatprep.subr.mxu0 0.0
      %1210 = vmatpush1.msra.mxu0 0.0
      %1211 = vmatprep.subr.mxu0 0.0
      %1212 = vmatpush1.msra.mxu0 0.0
      %1213 = vmatprep.subr.mxu0 0.0
      %1214 = vmatpush1.msra.mxu0 0.0
      %1215 = vmatprep.subr.mxu0 0.0
      %1216 = vmatpush1.msra.mxu0 0.0
      %1217 = vmatprep.subr.mxu0 0.0
      %1218 = vmatpush1.msra.mxu0 0.0
      %1219 = vmatprep.subr.mxu0 0.0
      %1220 = vmatpush1.msra.mxu0 0.0
      %1221 = vmatprep.subr.mxu0 0.0
      %1222 = vmatpush1.msra.mxu0 0.0
      %1223 = vmatprep.subr.mxu0 0.0
      %1224 = vmatpush1.msra.mxu0 0.0
      %1225 = vmatprep.subr.mxu0 0.0
      %1226 = vmatpush1.msra.mxu0 0.0
      %1227 = vmatprep.subr.mxu0 0.0
      %1228 = vmatpush1.msra.mxu0 0.0
      %1229 = vmatprep.subr.mxu0 0.0
      %1230 = vmatpush1.msra.mxu0 0.0
      %1231 = vmatprep.subr.mxu0 0.0
      %1232 = vmatpush1.msra.mxu0 0.0
      %1233 = vmatprep.subr.mxu0 0.0
      %1234 = vmatpush1.msra.mxu0 0.0
      %1235 = vmatprep.subr.mxu0 0.0
      %1236 = vmatpush1.msra.mxu0 0.0
      %1237 = vmatprep.subr.mxu0 0.0
      %1238 = vmatpush1.msra.mxu0 0.0
      %1239 = vmatprep.subr.mxu0 %v900
      %1240 = vmatpush1.msra.mxu0 %v899
      %1241 = vmatprep.subr.mxu0 0.0
      %1242 = vmatpush2.msra.mxu0 0.0
      %1243 = vmatprep.subr.mxu0 0.0
      %1244 = vmatpush2.msra.mxu0 0.0
      %1245 = vmatprep.subr.mxu0 0.0
      %1246 = vmatpush2.msra.mxu0 0.0
      %1247 = vmatprep.subr.mxu0 0.0
      %1248 = vmatpush2.msra.mxu0 0.0
      %1249 = vmatprep.subr.mxu0 0.0
      %1250 = vmatpush2.msra.mxu0 0.0
      %1251 = vmatprep.subr.mxu0 0.0
      %1252 = vmatpush2.msra.mxu0 0.0
      %1253 = vmatprep.subr.mxu0 0.0
      %1254 = vmatpush2.msra.mxu0 0.0
      %1255 = vmatprep.subr.mxu0 0.0
      %1256 = vmatpush2.msra.mxu0 0.0
      %1257 = vmatprep.subr.mxu0 0.0
      %1258 = vmatpush2.msra.mxu0 0.0
      %1259 = vmatprep.subr.mxu0 0.0
      %1260 = vmatpush2.msra.mxu0 0.0
      %1261 = vmatprep.subr.mxu0 0.0
      %1262 = vmatpush2.msra.mxu0 0.0
      %1263 = vmatprep.subr.mxu0 0.0
      %1264 = vmatpush2.msra.mxu0 0.0
      %1265 = vmatprep.subr.mxu0 0.0
      %1266 = vmatpush2.msra.mxu0 0.0
      %1267 = vmatprep.subr.mxu0 0.0
      %1268 = vmatpush2.msra.mxu0 0.0
      %1269 = vmatprep.subr.mxu0 0.0
      %1270 = vmatpush2.msra.mxu0 0.0
      %1271 = vmatprep.subr.mxu0 0.0
      %1272 = vmatpush2.msra.mxu0 0.0
      %1273 = vmatprep.mubr.f32.mxu0 0.0
      %1274 = vmatmul.mubr.f32.gmra.mxu0 %v912
      %v1275 = vpop.f32.mrf.mxu0
      %v1276 = vadd.f32 0.0, %v1275
      %v1277 = vpop.f32.mrf.mxu0
      %1278 = vmatprep.mubr.f32.mxu0 0.0
      %1279 = vmatmul.mubr.f32.gmra.mxu0 %v915
      %v1280 = vpop.f32.mrf.mxu0
      %v1281 = vadd.f32 0.0, %v1280
      %v1282 = vpop.f32.mrf.mxu0
      %1283 = vmatprep.mubr.f32.mxu0 0.0
      %1284 = vmatmul.mubr.f32.gmra.mxu0 %v918
      %v1285 = vpop.f32.mrf.mxu0
      %v1286 = vadd.f32 0.0, %v1285
      %v1287 = vpop.f32.mrf.mxu0
      %1288 = vmatprep.mubr.f32.mxu0 0.0
      %1289 = vmatmul.mubr.f32.gmra.mxu0 %v921
      %v1290 = vpop.f32.mrf.mxu0
      %v1291 = vadd.f32 0.0, %v1290
      %v1292 = vpop.f32.mrf.mxu0
      %1293 = vmatprep.mubr.f32.mxu0 0.0
      %1294 = vmatmul.mubr.f32.gmra.mxu0 %v924
      %v1295 = vpop.f32.mrf.mxu0
      %v1296 = vadd.f32 0.0, %v1295
      %v1297 = vpop.f32.mrf.mxu0
      %1298 = vmatprep.mubr.f32.mxu0 0.0
      %1299 = vmatmul.mubr.f32.gmra.mxu0 %v927
      %v1300 = vpop.f32.mrf.mxu0
      %v1301 = vadd.f32 0.0, %v1300
      %v1302 = vpop.f32.mrf.mxu0
      %1303 = vmatprep.mubr.f32.mxu0 0.0
      %1304 = vmatmul.mubr.f32.gmra.mxu0 %v930
      %v1305 = vpop.f32.mrf.mxu0
      %v1306 = vadd.f32 0.0, %v1305
      %v1307 = vpop.f32.mrf.mxu0
      %v1308 = vadd.f32 0.0, %v1307
      %1309 = vmatprep.mubr.f32.mxu0 0.0
      %1310 = vmatmul.mubr.f32.gmra.mxu0 %v933
      %v1311 = vpop.f32.mrf.mxu0
      %v1312 = vadd.f32 0.0, %v1311
      %v1313 = vpop.f32.mrf.mxu0
      %v1314 = vadd.f32 0.0, %v1313
      %1315 = vmatprep.mubr.f32.mxu0 0.0
      %1316 = vmatmul.mubr.f32.gmra.mxu0 %v936
      %v1317 = vpop.f32.mrf.mxu0
      %v1318 = vadd.f32 0.0, %v1317
      %v1319 = vpop.f32.mrf.mxu0
      %v1320 = vadd.f32 0.0, %v1319
      %1321 = vmatprep.mubr.f32.mxu0 0.0
      %1322 = vmatmul.mubr.f32.gmra.mxu0 %v939
      %v1323 = vpop.f32.mrf.mxu0
      %v1324 = vadd.f32 0.0, %v1323
      %v1325 = vpop.f32.mrf.mxu0
      %v1326 = vadd.f32 0.0, %v1325
      %1327 = vmatprep.mubr.f32.mxu0 0.0
      %1328 = vmatmul.mubr.f32.gmra.mxu0 %v942
      %v1329 = vpop.f32.mrf.mxu0
      %v1330 = vadd.f32 0.0, %v1329
      %v1331 = vpop.f32.mrf.mxu0
      %v1332 = vadd.f32 0.0, %v1331
      %1333 = vmatprep.mubr.f32.mxu0 0.0
      %1334 = vmatmul.mubr.f32.gmra.mxu0 %v945
      %v1335 = vpop.f32.mrf.mxu0
      %v1336 = vadd.f32 0.0, %v1335
      %v1337 = vpop.f32.mrf.mxu0
      %v1338 = vadd.f32 0.0, %v1337
      %1339 = vdwg.mxu0
      %1340 = vmatprep.subr.mxu0 0.0
      %1341 = vmatpush1.msra.mxu0 0.0
      %1342 = vmatprep.subr.mxu0 0.0
      %1343 = vmatpush1.msra.mxu0 0.0
      %1344 = vmatprep.subr.mxu0 0.0
      %1345 = vmatpush1.msra.mxu0 0.0
      %1346 = vmatprep.subr.mxu0 0.0
      %1347 = vmatpush1.msra.mxu0 0.0
      %1348 = vmatprep.subr.mxu0 0.0
      %1349 = vmatpush1.msra.mxu0 0.0
      %1350 = vmatprep.subr.mxu0 0.0
      %1351 = vmatpush1.msra.mxu0 0.0
      %1352 = vmatprep.subr.mxu0 0.0
      %1353 = vmatpush1.msra.mxu0 0.0
      %1354 = vmatprep.subr.mxu0 0.0
      %1355 = vmatpush1.msra.mxu0 0.0
      %1356 = vmatprep.subr.mxu0 0.0
      %1357 = vmatpush1.msra.mxu0 0.0
      %1358 = vmatprep.subr.mxu0 0.0
      %1359 = vmatpush1.msra.mxu0 0.0
      %1360 = vmatprep.subr.mxu0 0.0
      %1361 = vmatpush1.msra.mxu0 0.0
      %1362 = vmatprep.subr.mxu0 0.0
      %1363 = vmatpush1.msra.mxu0 0.0
      %1364 = vmatprep.subr.mxu0 0.0
      %1365 = vmatpush1.msra.mxu0 0.0
      %1366 = vmatprep.subr.mxu0 0.0
      %1367 = vmatpush1.msra.mxu0 0.0
      %1368 = vmatprep.subr.mxu0 0.0
      %1369 = vmatpush1.msra.mxu0 0.0
      %1370 = vmatprep.subr.mxu0 %v902
      %1371 = vmatpush1.msra.mxu0 %v901
      %1372 = vmatprep.subr.mxu0 0.0
      %1373 = vmatpush2.msra.mxu0 0.0
      %1374 = vmatprep.subr.mxu0 0.0
      %1375 = vmatpush2.msra.mxu0 0.0
      %1376 = vmatprep.subr.mxu0 0.0
      %1377 = vmatpush2.msra.mxu0 0.0
      %1378 = vmatprep.subr.mxu0 0.0
      %1379 = vmatpush2.msra.mxu0 0.0
      %1380 = vmatprep.subr.mxu0 0.0
      %1381 = vmatpush2.msra.mxu0 0.0
      %1382 = vmatprep.subr.mxu0 0.0
      %1383 = vmatpush2.msra.mxu0 0.0
      %1384 = vmatprep.subr.mxu0 0.0
      %1385 = vmatpush2.msra.mxu0 0.0
      %1386 = vmatprep.subr.mxu0 0.0
      %1387 = vmatpush2.msra.mxu0 0.0
      %1388 = vmatprep.subr.mxu0 0.0
      %1389 = vmatpush2.msra.mxu0 0.0
      %1390 = vmatprep.subr.mxu0 0.0
      %1391 = vmatpush2.msra.mxu0 0.0
      %1392 = vmatprep.subr.mxu0 0.0
      %1393 = vmatpush2.msra.mxu0 0.0
      %1394 = vmatprep.subr.mxu0 0.0
      %1395 = vmatpush2.msra.mxu0 0.0
      %1396 = vmatprep.subr.mxu0 0.0
      %1397 = vmatpush2.msra.mxu0 0.0
      %1398 = vmatprep.subr.mxu0 0.0
      %1399 = vmatpush2.msra.mxu0 0.0
      %1400 = vmatprep.subr.mxu0 0.0
      %1401 = vmatpush2.msra.mxu0 0.0
      %1402 = vmatprep.subr.mxu0 0.0
      %1403 = vmatpush2.msra.mxu0 0.0
      %1404 = vmatprep.mubr.f32.mxu0 0.0
      %1405 = vmatmul.mubr.f32.gmra.mxu0 %v912
      %v1406 = vpop.f32.mrf.mxu0
      %v1407 = vadd.f32 0.0, %v1406
      %v1408 = vpop.f32.mrf.mxu0
      %1409 = vmatprep.mubr.f32.mxu0 0.0
      %1410 = vmatmul.mubr.f32.gmra.mxu0 %v915
      %v1411 = vpop.f32.mrf.mxu0
      %v1412 = vadd.f32 0.0, %v1411
      %v1413 = vpop.f32.mrf.mxu0
      %1414 = vmatprep.mubr.f32.mxu0 0.0
      %1415 = vmatmul.mubr.f32.gmra.mxu0 %v918
      %v1416 = vpop.f32.mrf.mxu0
      %v1417 = vadd.f32 0.0, %v1416
      %v1418 = vpop.f32.mrf.mxu0
      %1419 = vmatprep.mubr.f32.mxu0 0.0
      %1420 = vmatmul.mubr.f32.gmra.mxu0 %v921
      %v1421 = vpop.f32.mrf.mxu0
      %v1422 = vadd.f32 0.0, %v1421
      %v1423 = vpop.f32.mrf.mxu0
      %1424 = vmatprep.mubr.f32.mxu0 0.0
      %1425 = vmatmul.mubr.f32.gmra.mxu0 %v924
      %v1426 = vpop.f32.mrf.mxu0
      %v1427 = vadd.f32 0.0, %v1426
      %v1428 = vpop.f32.mrf.mxu0
      %1429 = vmatprep.mubr.f32.mxu0 0.0
      %1430 = vmatmul.mubr.f32.gmra.mxu0 %v927
      %v1431 = vpop.f32.mrf.mxu0
      %v1432 = vadd.f32 0.0, %v1431
      %v1433 = vpop.f32.mrf.mxu0
      %1434 = vmatprep.mubr.f32.mxu0 0.0
      %1435 = vmatmul.mubr.f32.gmra.mxu0 %v930
      %v1436 = vpop.f32.mrf.mxu0
      %v1437 = vadd.f32 0.0, %v1436
      %v1438 = vpop.f32.mrf.mxu0
      %v1439 = vadd.f32 0.0, %v1438
      %1440 = vmatprep.mubr.f32.mxu0 0.0
      %1441 = vmatmul.mubr.f32.gmra.mxu0 %v933
      %v1442 = vpop.f32.mrf.mxu0
      %v1443 = vadd.f32 0.0, %v1442
      %v1444 = vpop.f32.mrf.mxu0
      %v1445 = vadd.f32 0.0, %v1444
      %1446 = vmatprep.mubr.f32.mxu0 0.0
      %1447 = vmatmul.mubr.f32.gmra.mxu0 %v936
      %v1448 = vpop.f32.mrf.mxu0
      %v1449 = vadd.f32 0.0, %v1448
      %v1450 = vpop.f32.mrf.mxu0
      %v1451 = vadd.f32 0.0, %v1450
      %1452 = vmatprep.mubr.f32.mxu0 0.0
      %1453 = vmatmul.mubr.f32.gmra.mxu0 %v939
      %v1454 = vpop.f32.mrf.mxu0
      %v1455 = vadd.f32 0.0, %v1454
      %v1456 = vpop.f32.mrf.mxu0
      %v1457 = vadd.f32 0.0, %v1456
      %1458 = vmatprep.mubr.f32.mxu0 0.0
      %1459 = vmatmul.mubr.f32.gmra.mxu0 %v942
      %v1460 = vpop.f32.mrf.mxu0
      %v1461 = vadd.f32 0.0, %v1460
      %v1462 = vpop.f32.mrf.mxu0
      %v1463 = vadd.f32 0.0, %v1462
      %1464 = vmatprep.mubr.f32.mxu0 0.0
      %1465 = vmatmul.mubr.f32.gmra.mxu0 %v945
      %v1466 = vpop.f32.mrf.mxu0
      %v1467 = vadd.f32 0.0, %v1466
      %v1468 = vpop.f32.mrf.mxu0
      %v1469 = vadd.f32 0.0, %v1468
      %1470 = vdwg.mxu0
      %1471 = vmatprep.subr.mxu0 0.0
      %1472 = vmatpush1.msra.mxu0 0.0
      %1473 = vmatprep.subr.mxu0 0.0
      %1474 = vmatpush1.msra.mxu0 0.0
      %1475 = vmatprep.subr.mxu0 0.0
      %1476 = vmatpush1.msra.mxu0 0.0
      %1477 = vmatprep.subr.mxu0 0.0
      %1478 = vmatpush1.msra.mxu0 0.0
      %1479 = vmatprep.subr.mxu0 0.0
      %1480 = vmatpush1.msra.mxu0 0.0
      %1481 = vmatprep.subr.mxu0 0.0
      %1482 = vmatpush1.msra.mxu0 0.0
      %1483 = vmatprep.subr.mxu0 0.0
      %1484 = vmatpush1.msra.mxu0 0.0
      %1485 = vmatprep.subr.mxu0 0.0
      %1486 = vmatpush1.msra.mxu0 0.0
      %1487 = vmatprep.subr.mxu0 0.0
      %1488 = vmatpush1.msra.mxu0 0.0
      %1489 = vmatprep.subr.mxu0 0.0
      %1490 = vmatpush1.msra.mxu0 0.0
      %1491 = vmatprep.subr.mxu0 0.0
      %1492 = vmatpush1.msra.mxu0 0.0
      %1493 = vmatprep.subr.mxu0 0.0
      %1494 = vmatpush1.msra.mxu0 0.0
      %1495 = vmatprep.subr.mxu0 0.0
      %1496 = vmatpush1.msra.mxu0 0.0
      %1497 = vmatprep.subr.mxu0 0.0
      %1498 = vmatpush1.msra.mxu0 0.0
      %1499 = vmatprep.subr.mxu0 0.0
      %1500 = vmatpush1.msra.mxu0 0.0
      %1501 = vmatprep.subr.mxu0 %v904
      %1502 = vmatpush1.msra.mxu0 %v903
      %1503 = vmatprep.subr.mxu0 0.0
      %1504 = vmatpush2.msra.mxu0 0.0
      %1505 = vmatprep.subr.mxu0 0.0
      %1506 = vmatpush2.msra.mxu0 0.0
      %1507 = vmatprep.subr.mxu0 0.0
      %1508 = vmatpush2.msra.mxu0 0.0
      %1509 = vmatprep.subr.mxu0 0.0
      %1510 = vmatpush2.msra.mxu0 0.0
      %1511 = vmatprep.subr.mxu0 0.0
      %1512 = vmatpush2.msra.mxu0 0.0
      %1513 = vmatprep.subr.mxu0 0.0
      %1514 = vmatpush2.msra.mxu0 0.0
      %1515 = vmatprep.subr.mxu0 0.0
      %1516 = vmatpush2.msra.mxu0 0.0
      %1517 = vmatprep.subr.mxu0 0.0
      %1518 = vmatpush2.msra.mxu0 0.0
      %1519 = vmatprep.subr.mxu0 0.0
      %1520 = vmatpush2.msra.mxu0 0.0
      %1521 = vmatprep.subr.mxu0 0.0
      %1522 = vmatpush2.msra.mxu0 0.0
      %1523 = vmatprep.subr.mxu0 0.0
      %1524 = vmatpush2.msra.mxu0 0.0
      %1525 = vmatprep.subr.mxu0 0.0
      %1526 = vmatpush2.msra.mxu0 0.0
      %1527 = vmatprep.subr.mxu0 0.0
      %1528 = vmatpush2.msra.mxu0 0.0
      %1529 = vmatprep.subr.mxu0 0.0
      %1530 = vmatpush2.msra.mxu0 0.0
      %1531 = vmatprep.subr.mxu0 0.0
      %1532 = vmatpush2.msra.mxu0 0.0
      %1533 = vmatprep.subr.mxu0 0.0
      %1534 = vmatpush2.msra.mxu0 0.0
      %1535 = vmatprep.mubr.f32.mxu0 0.0
      %1536 = vmatmul.mubr.f32.gmra.mxu0 %v912
      %v1537 = vpop.f32.mrf.mxu0
      %v1538 = vadd.f32 0.0, %v1537
      %v1539 = vpop.f32.mrf.mxu0
      %1540 = vmatprep.mubr.f32.mxu0 0.0
      %1541 = vmatmul.mubr.f32.gmra.mxu0 %v915
      %v1542 = vpop.f32.mrf.mxu0
      %v1543 = vadd.f32 0.0, %v1542
      %v1544 = vpop.f32.mrf.mxu0
      %1545 = vmatprep.mubr.f32.mxu0 0.0
      %1546 = vmatmul.mubr.f32.gmra.mxu0 %v918
      %v1547 = vpop.f32.mrf.mxu0
      %v1548 = vadd.f32 0.0, %v1547
      %v1549 = vpop.f32.mrf.mxu0
      %1550 = vmatprep.mubr.f32.mxu0 0.0
      %1551 = vmatmul.mubr.f32.gmra.mxu0 %v921
      %v1552 = vpop.f32.mrf.mxu0
      %v1553 = vadd.f32 0.0, %v1552
      %v1554 = vpop.f32.mrf.mxu0
      %1555 = vmatprep.mubr.f32.mxu0 0.0
      %1556 = vmatmul.mubr.f32.gmra.mxu0 %v924
      %v1557 = vpop.f32.mrf.mxu0
      %v1558 = vadd.f32 0.0, %v1557
      %v1559 = vpop.f32.mrf.mxu0
      %1560 = vmatprep.mubr.f32.mxu0 0.0
      %1561 = vmatmul.mubr.f32.gmra.mxu0 %v927
      %v1562 = vpop.f32.mrf.mxu0
      %v1563 = vadd.f32 0.0, %v1562
      %v1564 = vpop.f32.mrf.mxu0
      %1565 = vmatprep.mubr.f32.mxu0 0.0
      %1566 = vmatmul.mubr.f32.gmra.mxu0 %v930
      %v1567 = vpop.f32.mrf.mxu0
      %v1568 = vadd.f32 0.0, %v1567
      %v1569 = vpop.f32.mrf.mxu0
      %v1570 = vadd.f32 0.0, %v1569
      %1571 = vmatprep.mubr.f32.mxu0 0.0
      %1572 = vmatmul.mubr.f32.gmra.mxu0 %v933
      %v1573 = vpop.f32.mrf.mxu0
      %v1574 = vadd.f32 0.0, %v1573
      %v1575 = vpop.f32.mrf.mxu0
      %v1576 = vadd.f32 0.0, %v1575
      %1577 = vmatprep.mubr.f32.mxu0 0.0
      %1578 = vmatmul.mubr.f32.gmra.mxu0 %v936
      %v1579 = vpop.f32.mrf.mxu0
      %v1580 = vadd.f32 0.0, %v1579
      %v1581 = vpop.f32.mrf.mxu0
      %v1582 = vadd.f32 0.0, %v1581
      %1583 = vmatprep.mubr.f32.mxu0 0.0
      %1584 = vmatmul.mubr.f32.gmra.mxu0 %v939
      %v1585 = vpop.f32.mrf.mxu0
      %v1586 = vadd.f32 0.0, %v1585
      %v1587 = vpop.f32.mrf.mxu0
      %v1588 = vadd.f32 0.0, %v1587
      %1589 = vmatprep.mubr.f32.mxu0 0.0
      %1590 = vmatmul.mubr.f32.gmra.mxu0 %v942
      %v1591 = vpop.f32.mrf.mxu0
      %v1592 = vadd.f32 0.0, %v1591
      %v1593 = vpop.f32.mrf.mxu0
      %v1594 = vadd.f32 0.0, %v1593
      %1595 = vmatprep.mubr.f32.mxu0 0.0
      %1596 = vmatmul.mubr.f32.gmra.mxu0 %v945
      %v1597 = vpop.f32.mrf.mxu0
      %v1598 = vadd.f32 0.0, %v1597
      %v1599 = vpop.f32.mrf.mxu0
      %v1600 = vadd.f32 0.0, %v1599
      %1601 = vdwg.mxu0
      %1602 = vmatprep.subr.mxu0 0.0
      %1603 = vmatpush1.msra.mxu0 0.0
      %1604 = vmatprep.subr.mxu0 0.0
      %1605 = vmatpush1.msra.mxu0 0.0
      %1606 = vmatprep.subr.mxu0 0.0
      %1607 = vmatpush1.msra.mxu0 0.0
      %1608 = vmatprep.subr.mxu0 0.0
      %1609 = vmatpush1.msra.mxu0 0.0
      %1610 = vmatprep.subr.mxu0 0.0
      %1611 = vmatpush1.msra.mxu0 0.0
      %1612 = vmatprep.subr.mxu0 0.0
      %1613 = vmatpush1.msra.mxu0 0.0
      %1614 = vmatprep.subr.mxu0 0.0
      %1615 = vmatpush1.msra.mxu0 0.0
      %1616 = vmatprep.subr.mxu0 0.0
      %1617 = vmatpush1.msra.mxu0 0.0
      %1618 = vmatprep.subr.mxu0 0.0
      %1619 = vmatpush1.msra.mxu0 0.0
      %1620 = vmatprep.subr.mxu0 0.0
      %1621 = vmatpush1.msra.mxu0 0.0
      %1622 = vmatprep.subr.mxu0 0.0
      %1623 = vmatpush1.msra.mxu0 0.0
      %1624 = vmatprep.subr.mxu0 0.0
      %1625 = vmatpush1.msra.mxu0 0.0
      %1626 = vmatprep.subr.mxu0 0.0
      %1627 = vmatpush1.msra.mxu0 0.0
      %1628 = vmatprep.subr.mxu0 0.0
      %1629 = vmatpush1.msra.mxu0 0.0
      %1630 = vmatprep.subr.mxu0 0.0
      %1631 = vmatpush1.msra.mxu0 0.0
      %1632 = vmatprep.subr.mxu0 %v906
      %1633 = vmatpush1.msra.mxu0 %v905
      %1634 = vmatprep.subr.mxu0 0.0
      %1635 = vmatpush2.msra.mxu0 0.0
      %1636 = vmatprep.subr.mxu0 0.0
      %1637 = vmatpush2.msra.mxu0 0.0
      %1638 = vmatprep.subr.mxu0 0.0
      %1639 = vmatpush2.msra.mxu0 0.0
      %1640 = vmatprep.subr.mxu0 0.0
      %1641 = vmatpush2.msra.mxu0 0.0
      %1642 = vmatprep.subr.mxu0 0.0
      %1643 = vmatpush2.msra.mxu0 0.0
      %1644 = vmatprep.subr.mxu0 0.0
      %1645 = vmatpush2.msra.mxu0 0.0
      %1646 = vmatprep.subr.mxu0 0.0
      %1647 = vmatpush2.msra.mxu0 0.0
      %1648 = vmatprep.subr.mxu0 0.0
      %1649 = vmatpush2.msra.mxu0 0.0
      %1650 = vmatprep.subr.mxu0 0.0
      %1651 = vmatpush2.msra.mxu0 0.0
      %1652 = vmatprep.subr.mxu0 0.0
      %1653 = vmatpush2.msra.mxu0 0.0
      %1654 = vmatprep.subr.mxu0 0.0
      %1655 = vmatpush2.msra.mxu0 0.0
      %1656 = vmatprep.subr.mxu0 0.0
      %1657 = vmatpush2.msra.mxu0 0.0
      %1658 = vmatprep.subr.mxu0 0.0
      %1659 = vmatpush2.msra.mxu0 0.0
      %1660 = vmatprep.subr.mxu0 0.0
      %1661 = vmatpush2.msra.mxu0 0.0
      %1662 = vmatprep.subr.mxu0 0.0
      %1663 = vmatpush2.msra.mxu0 0.0
      %1664 = vmatprep.subr.mxu0 0.0
      %1665 = vmatpush2.msra.mxu0 0.0
      %1666 = vmatprep.mubr.f32.mxu0 0.0
      %1667 = vmatmul.mubr.f32.gmra.mxu0 %v912
      %v1668 = vpop.f32.mrf.mxu0
      %v1669 = vadd.f32 0.0, %v1668
      %v1670 = vpop.f32.mrf.mxu0
      %1671 = vmatprep.mubr.f32.mxu0 0.0
      %1672 = vmatmul.mubr.f32.gmra.mxu0 %v915
      %v1673 = vpop.f32.mrf.mxu0
      %v1674 = vadd.f32 0.0, %v1673
      %v1675 = vpop.f32.mrf.mxu0
      %1676 = vmatprep.mubr.f32.mxu0 0.0
      %1677 = vmatmul.mubr.f32.gmra.mxu0 %v918
      %v1678 = vpop.f32.mrf.mxu0
      %v1679 = vadd.f32 0.0, %v1678
      %v1680 = vpop.f32.mrf.mxu0
      %1681 = vmatprep.mubr.f32.mxu0 0.0
      %1682 = vmatmul.mubr.f32.gmra.mxu0 %v921
      %v1683 = vpop.f32.mrf.mxu0
      %v1684 = vadd.f32 0.0, %v1683
      %v1685 = vpop.f32.mrf.mxu0
      %1686 = vmatprep.mubr.f32.mxu0 0.0
      %1687 = vmatmul.mubr.f32.gmra.mxu0 %v924
      %v1688 = vpop.f32.mrf.mxu0
      %v1689 = vadd.f32 0.0, %v1688
      %v1690 = vpop.f32.mrf.mxu0
      %1691 = vmatprep.mubr.f32.mxu0 0.0
      %1692 = vmatmul.mubr.f32.gmra.mxu0 %v927
      %v1693 = vpop.f32.mrf.mxu0
      %v1694 = vadd.f32 0.0, %v1693
      %v1695 = vpop.f32.mrf.mxu0
      %1696 = vmatprep.mubr.f32.mxu0 0.0
      %1697 = vmatmul.mubr.f32.gmra.mxu0 %v930
      %v1698 = vpop.f32.mrf.mxu0
      %v1699 = vadd.f32 0.0, %v1698
      %v1700 = vpop.f32.mrf.mxu0
      %v1701 = vadd.f32 0.0, %v1700
      %1702 = vmatprep.mubr.f32.mxu0 0.0
      %1703 = vmatmul.mubr.f32.gmra.mxu0 %v933
      %v1704 = vpop.f32.mrf.mxu0
      %v1705 = vadd.f32 0.0, %v1704
      %v1706 = vpop.f32.mrf.mxu0
      %v1707 = vadd.f32 0.0, %v1706
      %1708 = vmatprep.mubr.f32.mxu0 0.0
      %1709 = vmatmul.mubr.f32.gmra.mxu0 %v936
      %v1710 = vpop.f32.mrf.mxu0
      %v1711 = vadd.f32 0.0, %v1710
      %v1712 = vpop.f32.mrf.mxu0
      %v1713 = vadd.f32 0.0, %v1712
      %1714 = vmatprep.mubr.f32.mxu0 0.0
      %1715 = vmatmul.mubr.f32.gmra.mxu0 %v939
      %v1716 = vpop.f32.mrf.mxu0
      %v1717 = vadd.f32 0.0, %v1716
      %v1718 = vpop.f32.mrf.mxu0
      %v1719 = vadd.f32 0.0, %v1718
      %1720 = vmatprep.mubr.f32.mxu0 0.0
      %1721 = vmatmul.mubr.f32.gmra.mxu0 %v942
      %v1722 = vpop.f32.mrf.mxu0
      %v1723 = vadd.f32 0.0, %v1722
      %v1724 = vpop.f32.mrf.mxu0
      %v1725 = vadd.f32 0.0, %v1724
      %1726 = vmatprep.mubr.f32.mxu0 0.0
      %1727 = vmatmul.mubr.f32.gmra.mxu0 %v945
      %v1728 = vpop.f32.mrf.mxu0
      %v1729 = vadd.f32 0.0, %v1728
      %v1730 = vpop.f32.mrf.mxu0
      %v1731 = vadd.f32 0.0, %v1730
      %1732 = vdwg.mxu0
      %1733 = vmatprep.subr.mxu0 0.0
      %1734 = vmatpush1.msra.mxu0 0.0
      %1735 = vmatprep.subr.mxu0 0.0
      %1736 = vmatpush1.msra.mxu0 0.0
      %1737 = vmatprep.subr.mxu0 0.0
      %1738 = vmatpush1.msra.mxu0 0.0
      %1739 = vmatprep.subr.mxu0 0.0
      %1740 = vmatpush1.msra.mxu0 0.0
      %1741 = vmatprep.subr.mxu0 0.0
      %1742 = vmatpush1.msra.mxu0 0.0
      %1743 = vmatprep.subr.mxu0 0.0
      %1744 = vmatpush1.msra.mxu0 0.0
      %1745 = vmatprep.subr.mxu0 0.0
      %1746 = vmatpush1.msra.mxu0 0.0
      %1747 = vmatprep.subr.mxu0 0.0
      %1748 = vmatpush1.msra.mxu0 0.0
      %1749 = vmatprep.subr.mxu0 0.0
      %1750 = vmatpush1.msra.mxu0 0.0
      %1751 = vmatprep.subr.mxu0 0.0
      %1752 = vmatpush1.msra.mxu0 0.0
      %1753 = vmatprep.subr.mxu0 0.0
      %1754 = vmatpush1.msra.mxu0 0.0
      %1755 = vmatprep.subr.mxu0 0.0
      %1756 = vmatpush1.msra.mxu0 0.0
      %1757 = vmatprep.subr.mxu0 0.0
      %1758 = vmatpush1.msra.mxu0 0.0
      %1759 = vmatprep.subr.mxu0 0.0
      %1760 = vmatpush1.msra.mxu0 0.0
      %1761 = vmatprep.subr.mxu0 0.0
      %1762 = vmatpush1.msra.mxu0 0.0
      %1763 = vmatprep.subr.mxu0 %v908
      %1764 = vmatpush1.msra.mxu0 %v907
      %1765 = vmatprep.subr.mxu0 0.0
      %1766 = vmatpush2.msra.mxu0 0.0
      %1767 = vmatprep.subr.mxu0 0.0
      %1768 = vmatpush2.msra.mxu0 0.0
      %1769 = vmatprep.subr.mxu0 0.0
      %1770 = vmatpush2.msra.mxu0 0.0
      %1771 = vmatprep.subr.mxu0 0.0
      %1772 = vmatpush2.msra.mxu0 0.0
      %1773 = vmatprep.subr.mxu0 0.0
      %1774 = vmatpush2.msra.mxu0 0.0
      %1775 = vmatprep.subr.mxu0 0.0
      %1776 = vmatpush2.msra.mxu0 0.0
      %1777 = vmatprep.subr.mxu0 0.0
      %1778 = vmatpush2.msra.mxu0 0.0
      %1779 = vmatprep.subr.mxu0 0.0
      %1780 = vmatpush2.msra.mxu0 0.0
      %1781 = vmatprep.subr.mxu0 0.0
      %1782 = vmatpush2.msra.mxu0 0.0
      %1783 = vmatprep.subr.mxu0 0.0
      %1784 = vmatpush2.msra.mxu0 0.0
      %1785 = vmatprep.subr.mxu0 0.0
      %1786 = vmatpush2.msra.mxu0 0.0
      %1787 = vmatprep.subr.mxu0 0.0
      %1788 = vmatpush2.msra.mxu0 0.0
      %1789 = vmatprep.subr.mxu0 0.0
      %1790 = vmatpush2.msra.mxu0 0.0
      %1791 = vmatprep.subr.mxu0 0.0
      %1792 = vmatpush2.msra.mxu0 0.0
      %1793 = vmatprep.subr.mxu0 0.0
      %1794 = vmatpush2.msra.mxu0 0.0
      %1795 = vmatprep.subr.mxu0 0.0
      %1796 = vmatpush2.msra.mxu0 0.0
      %1797 = vmatprep.mubr.f32.mxu0 0.0
      %1798 = vmatmul.mubr.f32.gmra.mxu0 %v912
      %v1799 = vpop.f32.mrf.mxu0
      %v1800 = vadd.f32 0.0, %v1799
      %v1801 = vpop.f32.mrf.mxu0
      %1802 = vmatprep.mubr.f32.mxu0 0.0
      %1803 = vmatmul.mubr.f32.gmra.mxu0 %v915
      %v1804 = vpop.f32.mrf.mxu0
      %v1805 = vadd.f32 0.0, %v1804
      %v1806 = vpop.f32.mrf.mxu0
      %1807 = vmatprep.mubr.f32.mxu0 0.0
      %1808 = vmatmul.mubr.f32.gmra.mxu0 %v918
      %v1809 = vpop.f32.mrf.mxu0
      %v1810 = vadd.f32 0.0, %v1809
      %v1811 = vpop.f32.mrf.mxu0
      %1812 = vmatprep.mubr.f32.mxu0 0.0
      %1813 = vmatmul.mubr.f32.gmra.mxu0 %v921
      %v1814 = vpop.f32.mrf.mxu0
      %v1815 = vadd.f32 0.0, %v1814
      %v1816 = vpop.f32.mrf.mxu0
      %1817 = vmatprep.mubr.f32.mxu0 0.0
      %1818 = vmatmul.mubr.f32.gmra.mxu0 %v924
      %v1819 = vpop.f32.mrf.mxu0
      %v1820 = vadd.f32 0.0, %v1819
      %v1821 = vpop.f32.mrf.mxu0
      %1822 = vmatprep.mubr.f32.mxu0 0.0
      %1823 = vmatmul.mubr.f32.gmra.mxu0 %v927
      %v1824 = vpop.f32.mrf.mxu0
      %v1825 = vadd.f32 0.0, %v1824
      %v1826 = vpop.f32.mrf.mxu0
      %1827 = vmatprep.mubr.f32.mxu0 0.0
      %1828 = vmatmul.mubr.f32.gmra.mxu0 %v930
      %v1829 = vpop.f32.mrf.mxu0
      %v1830 = vadd.f32 0.0, %v1829
      %v1831 = vpop.f32.mrf.mxu0
      %v1832 = vadd.f32 0.0, %v1831
      %1833 = vmatprep.mubr.f32.mxu0 0.0
      %1834 = vmatmul.mubr.f32.gmra.mxu0 %v933
      %v1835 = vpop.f32.mrf.mxu0
      %v1836 = vadd.f32 0.0, %v1835
      %v1837 = vpop.f32.mrf.mxu0
      %v1838 = vadd.f32 0.0, %v1837
      %1839 = vmatprep.mubr.f32.mxu0 0.0
      %1840 = vmatmul.mubr.f32.gmra.mxu0 %v936
      %v1841 = vpop.f32.mrf.mxu0
      %v1842 = vadd.f32 0.0, %v1841
      %v1843 = vpop.f32.mrf.mxu0
      %v1844 = vadd.f32 0.0, %v1843
      %1845 = vmatprep.mubr.f32.mxu0 0.0
      %1846 = vmatmul.mubr.f32.gmra.mxu0 %v939
      %v1847 = vpop.f32.mrf.mxu0
      %v1848 = vadd.f32 0.0, %v1847
      %v1849 = vpop.f32.mrf.mxu0
      %v1850 = vadd.f32 0.0, %v1849
      %1851 = vmatprep.mubr.f32.mxu0 0.0
      %1852 = vmatmul.mubr.f32.gmra.mxu0 %v942
      %v1853 = vpop.f32.mrf.mxu0
      %v1854 = vadd.f32 0.0, %v1853
      %v1855 = vpop.f32.mrf.mxu0
      %v1856 = vadd.f32 0.0, %v1855
      %1857 = vmatprep.mubr.f32.mxu0 0.0
      %1858 = vmatmul.mubr.f32.gmra.mxu0 %v945
      %v1859 = vpop.f32.mrf.mxu0
      %v1860 = vadd.f32 0.0, %v1859
      %v1861 = vpop.f32.mrf.mxu0
      %v1862 = vadd.f32 0.0, %v1861
      %1863 = vdwg.mxu0
      %1864 = vmatprep.subr.mxu0 0.0
      %1865 = vmatpush1.msra.mxu0 0.0
      %1866 = vmatprep.subr.mxu0 0.0
      %1867 = vmatpush1.msra.mxu0 0.0
      %1868 = vmatprep.subr.mxu0 0.0
      %1869 = vmatpush1.msra.mxu0 0.0
      %1870 = vmatprep.subr.mxu0 0.0
      %1871 = vmatpush1.msra.mxu0 0.0
      %1872 = vmatprep.subr.mxu0 0.0
      %1873 = vmatpush1.msra.mxu0 0.0
      %1874 = vmatprep.subr.mxu0 0.0
      %1875 = vmatpush1.msra.mxu0 0.0
      %1876 = vmatprep.subr.mxu0 0.0
      %1877 = vmatpush1.msra.mxu0 0.0
      %1878 = vmatprep.subr.mxu0 0.0
      %1879 = vmatpush1.msra.mxu0 0.0
      %1880 = vmatprep.subr.mxu0 0.0
      %1881 = vmatpush1.msra.mxu0 0.0
      %1882 = vmatprep.subr.mxu0 0.0
      %1883 = vmatpush1.msra.mxu0 0.0
      %1884 = vmatprep.subr.mxu0 0.0
      %1885 = vmatpush1.msra.mxu0 0.0
      %1886 = vmatprep.subr.mxu0 0.0
      %1887 = vmatpush1.msra.mxu0 0.0
      %1888 = vmatprep.subr.mxu0 0.0
      %1889 = vmatpush1.msra.mxu0 0.0
      %1890 = vmatprep.subr.mxu0 0.0
      %1891 = vmatpush1.msra.mxu0 0.0
      %1892 = vmatprep.subr.mxu0 0.0
      %1893 = vmatpush1.msra.mxu0 0.0
      %1894 = vmatprep.subr.mxu0 %v910
      %1895 = vmatpush1.msra.mxu0 %v909
      %1896 = vmatprep.subr.mxu0 0.0
      %1897 = vmatpush2.msra.mxu0 0.0
      %1898 = vmatprep.subr.mxu0 0.0
      %1899 = vmatpush2.msra.mxu0 0.0
      %1900 = vmatprep.subr.mxu0 0.0
      %1901 = vmatpush2.msra.mxu0 0.0
      %1902 = vmatprep.subr.mxu0 0.0
      %1903 = vmatpush2.msra.mxu0 0.0
      %1904 = vmatprep.subr.mxu0 0.0
      %1905 = vmatpush2.msra.mxu0 0.0
      %1906 = vmatprep.subr.mxu0 0.0
      %1907 = vmatpush2.msra.mxu0 0.0
      %1908 = vmatprep.subr.mxu0 0.0
      %1909 = vmatpush2.msra.mxu0 0.0
      %1910 = vmatprep.subr.mxu0 0.0
      %1911 = vmatpush2.msra.mxu0 0.0
      %1912 = vmatprep.subr.mxu0 0.0
      %1913 = vmatpush2.msra.mxu0 0.0
      %1914 = vmatprep.subr.mxu0 0.0
      %1915 = vmatpush2.msra.mxu0 0.0
      %1916 = vmatprep.subr.mxu0 0.0
      %1917 = vmatpush2.msra.mxu0 0.0
      %1918 = vmatprep.subr.mxu0 0.0
      %1919 = vmatpush2.msra.mxu0 0.0
      %1920 = vmatprep.subr.mxu0 0.0
      %1921 = vmatpush2.msra.mxu0 0.0
      %1922 = vmatprep.subr.mxu0 0.0
      %1923 = vmatpush2.msra.mxu0 0.0
      %1924 = vmatprep.subr.mxu0 0.0
      %1925 = vmatpush2.msra.mxu0 0.0
      %1926 = vmatprep.subr.mxu0 0.0
      %1927 = vmatpush2.msra.mxu0 0.0
      %1928 = vmatprep.mubr.f32.mxu0 0.0
      %1929 = vmatmul.mubr.f32.gmra.mxu0 %v912
      %v1930 = vpop.f32.mrf.mxu0
      %v1931 = vadd.f32 0.0, %v1930
      %v1932 = vpop.f32.mrf.mxu0
      %1933 = vmatprep.mubr.f32.mxu0 0.0
      %1934 = vmatmul.mubr.f32.gmra.mxu0 %v915
      %v1935 = vpop.f32.mrf.mxu0
      %v1936 = vadd.f32 0.0, %v1935
      %v1937 = vpop.f32.mrf.mxu0
      %1938 = vmatprep.mubr.f32.mxu0 0.0
      %1939 = vmatmul.mubr.f32.gmra.mxu0 %v918
      %v1940 = vpop.f32.mrf.mxu0
      %v1941 = vadd.f32 0.0, %v1940
      %v1942 = vpop.f32.mrf.mxu0
      %1943 = vmatprep.mubr.f32.mxu0 0.0
      %1944 = vmatmul.mubr.f32.gmra.mxu0 %v921
      %v1945 = vpop.f32.mrf.mxu0
      %v1946 = vadd.f32 0.0, %v1945
      %v1947 = vpop.f32.mrf.mxu0
      %1948 = vmatprep.mubr.f32.mxu0 0.0
      %1949 = vmatmul.mubr.f32.gmra.mxu0 %v924
      %v1950 = vpop.f32.mrf.mxu0
      %v1951 = vadd.f32 0.0, %v1950
      %v1952 = vpop.f32.mrf.mxu0
      %1953 = vmatprep.mubr.f32.mxu0 0.0
      %1954 = vmatmul.mubr.f32.gmra.mxu0 %v927
      %v1955 = vpop.f32.mrf.mxu0
      %v1956 = vadd.f32 0.0, %v1955
      %v1957 = vpop.f32.mrf.mxu0
      %1958 = vmatprep.mubr.f32.mxu0 0.0
      %1959 = vmatmul.mubr.f32.gmra.mxu0 %v930
      %v1960 = vpop.f32.mrf.mxu0
      %v1961 = vadd.f32 0.0, %v1960
      %v1962 = vpop.f32.mrf.mxu0
      %v1963 = vadd.f32 0.0, %v1962
      %1964 = vmatprep.mubr.f32.mxu0 0.0
      %1965 = vmatmul.mubr.f32.gmra.mxu0 %v933
      %v1966 = vpop.f32.mrf.mxu0
      %v1967 = vadd.f32 0.0, %v1966
      %v1968 = vpop.f32.mrf.mxu0
      %v1969 = vadd.f32 0.0, %v1968
      %1970 = vmatprep.mubr.f32.mxu0 0.0
      %1971 = vmatmul.mubr.f32.gmra.mxu0 %v936
      %v1972 = vpop.f32.mrf.mxu0
      %v1973 = vadd.f32 0.0, %v1972
      %v1974 = vpop.f32.mrf.mxu0
      %v1975 = vadd.f32 0.0, %v1974
      %1976 = vmatprep.mubr.f32.mxu0 0.0
      %1977 = vmatmul.mubr.f32.gmra.mxu0 %v939
      %v1978 = vpop.f32.mrf.mxu0
      %v1979 = vadd.f32 0.0, %v1978
      %v1980 = vpop.f32.mrf.mxu0
      %v1981 = vadd.f32 0.0, %v1980
      %1982 = vmatprep.mubr.f32.mxu0 0.0
      %1983 = vmatmul.mubr.f32.gmra.mxu0 %v942
      %v1984 = vpop.f32.mrf.mxu0
      %v1985 = vadd.f32 0.0, %v1984
      %v1986 = vpop.f32.mrf.mxu0
      %v1987 = vadd.f32 0.0, %v1986
      %1988 = vmatprep.mubr.f32.mxu0 0.0
      %1989 = vmatmul.mubr.f32.gmra.mxu0 %v945
      %v1990 = vpop.f32.mrf.mxu0
      %v1991 = vadd.f32 0.0, %v1990
      %v1992 = vpop.f32.mrf.mxu0
      %v1993 = vadd.f32 0.0, %v1992
      %1994 = vdwg.mxu0
      %2003 = vrot.lane.b32.xlu0 %v1019, 127
      %v2004 = vpop.permute.xlu0 %2003
      %2005 = vrot.lane.b32.xlu0 %v1150, 127
      %v2006 = vpop.permute.xlu0 %2005
      %2007 = vrot.lane.b32.xlu0 %v1281, 127
      %v2008 = vpop.permute.xlu0 %2007
      %2009 = vrot.lane.b32.xlu0 %v1412, 127
      %v2010 = vpop.permute.xlu0 %2009
      %2011 = vrot.lane.b32.xlu0 %v1543, 127
      %v2012 = vpop.permute.xlu0 %2011
      %2013 = vrot.lane.b32.xlu0 %v1674, 127
      %v2014 = vpop.permute.xlu0 %2013
      %2015 = vrot.lane.b32.xlu0 %v1805, 127
      %v2016 = vpop.permute.xlu0 %2015
      %2017 = vrot.lane.b32.xlu0 %v1936, 127
      %v2018 = vpop.permute.xlu0 %2017
      %v2027 = vadd.f32 %v1014, %v2004
      %v2028 = vadd.f32 %v1145, %v2006
      %v2029 = vadd.f32 %v1276, %v2008
      %v2030 = vadd.f32 %v1407, %v2010
      %v2031 = vadd.f32 %v1538, %v2012
      %v2032 = vadd.f32 %v1669, %v2014
      %v2033 = vadd.f32 %v1800, %v2016
      %v2034 = vadd.f32 %v1931, %v2018
      %2043 = vrot.lane.b32.xlu0 %v1024, 126
      %v2044 = vpop.permute.xlu0 %2043
      %2045 = vrot.lane.b32.xlu0 %v1155, 126
      %v2046 = vpop.permute.xlu0 %2045
      %2047 = vrot.lane.b32.xlu0 %v1286, 126
      %v2048 = vpop.permute.xlu0 %2047
      %2049 = vrot.lane.b32.xlu0 %v1417, 126
      %v2050 = vpop.permute.xlu0 %2049
      %2051 = vrot.lane.b32.xlu0 %v1548, 126
      %v2052 = vpop.permute.xlu0 %2051
      %2053 = vrot.lane.b32.xlu0 %v1679, 126
      %v2054 = vpop.permute.xlu0 %2053
      %2055 = vrot.lane.b32.xlu0 %v1810, 126
      %v2056 = vpop.permute.xlu0 %2055
      %2057 = vrot.lane.b32.xlu0 %v1941, 126
      %v2058 = vpop.permute.xlu0 %2057
      %v2067 = vadd.f32 %v2027, %v2044
      %v2068 = vadd.f32 %v2028, %v2046
      %v2069 = vadd.f32 %v2029, %v2048
      %v2070 = vadd.f32 %v2030, %v2050
      %v2071 = vadd.f32 %v2031, %v2052
      %v2072 = vadd.f32 %v2032, %v2054
      %v2073 = vadd.f32 %v2033, %v2056
      %v2074 = vadd.f32 %v2034, %v2058
      %2083 = vrot.lane.b32.xlu0 %v1029, 125
      %v2084 = vpop.permute.xlu0 %2083
      %2085 = vrot.lane.b32.xlu0 %v1160, 125
      %v2086 = vpop.permute.xlu0 %2085
      %2087 = vrot.lane.b32.xlu0 %v1291, 125
      %v2088 = vpop.permute.xlu0 %2087
      %2089 = vrot.lane.b32.xlu0 %v1422, 125
      %v2090 = vpop.permute.xlu0 %2089
      %2091 = vrot.lane.b32.xlu0 %v1553, 125
      %v2092 = vpop.permute.xlu0 %2091
      %2093 = vrot.lane.b32.xlu0 %v1684, 125
      %v2094 = vpop.permute.xlu0 %2093
      %2095 = vrot.lane.b32.xlu0 %v1815, 125
      %v2096 = vpop.permute.xlu0 %2095
      %2097 = vrot.lane.b32.xlu0 %v1946, 125
      %v2098 = vpop.permute.xlu0 %2097
      %v2107 = vadd.f32 %v2067, %v2084
      %v2108 = vadd.f32 %v2068, %v2086
      %v2109 = vadd.f32 %v2069, %v2088
      %v2110 = vadd.f32 %v2070, %v2090
      %v2111 = vadd.f32 %v2071, %v2092
      %v2112 = vadd.f32 %v2072, %v2094
      %v2113 = vadd.f32 %v2073, %v2096
      %v2114 = vadd.f32 %v2074, %v2098
      %2123 = vrot.lane.b32.xlu0 %v1034, 124
      %v2124 = vpop.permute.xlu0 %2123
      %2125 = vrot.lane.b32.xlu0 %v1165, 124
      %v2126 = vpop.permute.xlu0 %2125
      %2127 = vrot.lane.b32.xlu0 %v1296, 124
      %v2128 = vpop.permute.xlu0 %2127
      %2129 = vrot.lane.b32.xlu0 %v1427, 124
      %v2130 = vpop.permute.xlu0 %2129
      %2131 = vrot.lane.b32.xlu0 %v1558, 124
      %v2132 = vpop.permute.xlu0 %2131
      %2133 = vrot.lane.b32.xlu0 %v1689, 124
      %v2134 = vpop.permute.xlu0 %2133
      %2135 = vrot.lane.b32.xlu0 %v1820, 124
      %v2136 = vpop.permute.xlu0 %2135
      %2137 = vrot.lane.b32.xlu0 %v1951, 124
      %v2138 = vpop.permute.xlu0 %2137
      %v2147 = vadd.f32 %v2107, %v2124
      %v2148 = vadd.f32 %v2108, %v2126
      %v2149 = vadd.f32 %v2109, %v2128
      %v2150 = vadd.f32 %v2110, %v2130
      %v2151 = vadd.f32 %v2111, %v2132
      %v2152 = vadd.f32 %v2112, %v2134
      %v2153 = vadd.f32 %v2113, %v2136
      %v2154 = vadd.f32 %v2114, %v2138
      %2163 = vrot.lane.b32.xlu0 %v1039, 123
      %v2164 = vpop.permute.xlu0 %2163
      %2165 = vrot.lane.b32.xlu0 %v1170, 123
      %v2166 = vpop.permute.xlu0 %2165
      %2167 = vrot.lane.b32.xlu0 %v1301, 123
      %v2168 = vpop.permute.xlu0 %2167
      %2169 = vrot.lane.b32.xlu0 %v1432, 123
      %v2170 = vpop.permute.xlu0 %2169
      %2171 = vrot.lane.b32.xlu0 %v1563, 123
      %v2172 = vpop.permute.xlu0 %2171
      %2173 = vrot.lane.b32.xlu0 %v1694, 123
      %v2174 = vpop.permute.xlu0 %2173
      %2175 = vrot.lane.b32.xlu0 %v1825, 123
      %v2176 = vpop.permute.xlu0 %2175
      %2177 = vrot.lane.b32.xlu0 %v1956, 123
      %v2178 = vpop.permute.xlu0 %2177
      %v2187 = vadd.f32 %v2147, %v2164
      %v2188 = vadd.f32 %v2148, %v2166
      %v2189 = vadd.f32 %v2149, %v2168
      %v2190 = vadd.f32 %v2150, %v2170
      %v2191 = vadd.f32 %v2151, %v2172
      %v2192 = vadd.f32 %v2152, %v2174
      %v2193 = vadd.f32 %v2153, %v2176
      %v2194 = vadd.f32 %v2154, %v2178
      %2211 = vrot.lane.b32.xlu0 %v1044, 122
      %v2212 = vpop.permute.xlu0 %2211
      %2213 = vrot.lane.b32.xlu0 %v1046, 122
      %v2214 = vpop.permute.xlu0 %2213
      %2215 = vrot.lane.b32.xlu0 %v1175, 122
      %v2216 = vpop.permute.xlu0 %2215
      %2217 = vrot.lane.b32.xlu0 %v1177, 122
      %v2218 = vpop.permute.xlu0 %2217
      %2219 = vrot.lane.b32.xlu0 %v1306, 122
      %v2220 = vpop.permute.xlu0 %2219
      %2221 = vrot.lane.b32.xlu0 %v1308, 122
      %v2222 = vpop.permute.xlu0 %2221
      %2223 = vrot.lane.b32.xlu0 %v1437, 122
      %v2224 = vpop.permute.xlu0 %2223
      %2225 = vrot.lane.b32.xlu0 %v1439, 122
      %v2226 = vpop.permute.xlu0 %2225
      %2227 = vrot.lane.b32.xlu0 %v1568, 122
      %v2228 = vpop.permute.xlu0 %2227
      %2229 = vrot.lane.b32.xlu0 %v1570, 122
      %v2230 = vpop.permute.xlu0 %2229
      %2231 = vrot.lane.b32.xlu0 %v1699, 122
      %v2232 = vpop.permute.xlu0 %2231
      %2233 = vrot.lane.b32.xlu0 %v1701, 122
      %v2234 = vpop.permute.xlu0 %2233
      %2235 = vrot.lane.b32.xlu0 %v1830, 122
      %v2236 = vpop.permute.xlu0 %2235
      %2237 = vrot.lane.b32.xlu0 %v1832, 122
      %v2238 = vpop.permute.xlu0 %2237
      %2239 = vrot.lane.b32.xlu0 %v1961, 122
      %v2240 = vpop.permute.xlu0 %2239
      %2241 = vrot.lane.b32.xlu0 %v1963, 122
      %v2242 = vpop.permute.xlu0 %2241
      %vm2243 = vcmask 998400
      %v2244 = vsel %vm2243, %v2212, %v2214
      %v2245 = vsel %vm2243, %v2216, %v2218
      %v2246 = vsel %vm2243, %v2220, %v2222
      %v2247 = vsel %vm2243, %v2224, %v2226
      %v2248 = vsel %vm2243, %v2228, %v2230
      %v2249 = vsel %vm2243, %v2232, %v2234
      %v2250 = vsel %vm2243, %v2236, %v2238
      %v2251 = vsel %vm2243, %v2240, %v2242
      %v2260 = vadd.f32 %v2187, %v2244
      %v2261 = vadd.f32 %v2188, %v2245
      %v2262 = vadd.f32 %v2189, %v2246
      %v2263 = vadd.f32 %v2190, %v2247
      %v2264 = vadd.f32 %v2191, %v2248
      %v2265 = vadd.f32 %v2192, %v2249
      %v2266 = vadd.f32 %v2193, %v2250
      %v2267 = vadd.f32 %v2194, %v2251
      %2284 = vrot.lane.b32.xlu0 %v1050, 121
      %v2285 = vpop.permute.xlu0 %2284
      %2286 = vrot.lane.b32.xlu0 %v1052, 121
      %v2287 = vpop.permute.xlu0 %2286
      %2288 = vrot.lane.b32.xlu0 %v1181, 121
      %v2289 = vpop.permute.xlu0 %2288
      %2290 = vrot.lane.b32.xlu0 %v1183, 121
      %v2291 = vpop.permute.xlu0 %2290
      %2292 = vrot.lane.b32.xlu0 %v1312, 121
      %v2293 = vpop.permute.xlu0 %2292
      %2294 = vrot.lane.b32.xlu0 %v1314, 121
      %v2295 = vpop.permute.xlu0 %2294
      %2296 = vrot.lane.b32.xlu0 %v1443, 121
      %v2297 = vpop.permute.xlu0 %2296
      %2298 = vrot.lane.b32.xlu0 %v1445, 121
      %v2299 = vpop.permute.xlu0 %2298
      %2300 = vrot.lane.b32.xlu0 %v1574, 121
      %v2301 = vpop.permute.xlu0 %2300
      %2302 = vrot.lane.b32.xlu0 %v1576, 121
      %v2303 = vpop.permute.xlu0 %2302
      %2304 = vrot.lane.b32.xlu0 %v1705, 121
      %v2305 = vpop.permute.xlu0 %2304
      %2306 = vrot.lane.b32.xlu0 %v1707, 121
      %v2307 = vpop.permute.xlu0 %2306
      %2308 = vrot.lane.b32.xlu0 %v1836, 121
      %v2309 = vpop.permute.xlu0 %2308
      %2310 = vrot.lane.b32.xlu0 %v1838, 121
      %v2311 = vpop.permute.xlu0 %2310
      %2312 = vrot.lane.b32.xlu0 %v1967, 121
      %v2313 = vpop.permute.xlu0 %2312
      %2314 = vrot.lane.b32.xlu0 %v1969, 121
      %v2315 = vpop.permute.xlu0 %2314
      %vm2316 = vcmask 990208
      %v2317 = vsel %vm2316, %v2285, %v2287
      %v2318 = vsel %vm2316, %v2289, %v2291
      %v2319 = vsel %vm2316, %v2293, %v2295
      %v2320 = vsel %vm2316, %v2297, %v2299
      %v2321 = vsel %vm2316, %v2301, %v2303
      %v2322 = vsel %vm2316, %v2305, %v2307
      %v2323 = vsel %vm2316, %v2309, %v2311
      %v2324 = vsel %vm2316, %v2313, %v2315
      %v2333 = vadd.f32 %v2260, %v2317
      %v2334 = vadd.f32 %v2261, %v2318
      %v2335 = vadd.f32 %v2262, %v2319
      %v2336 = vadd.f32 %v2263, %v2320
      %v2337 = vadd.f32 %v2264, %v2321
      %v2338 = vadd.f32 %v2265, %v2322
      %v2339 = vadd.f32 %v2266, %v2323
      %v2340 = vadd.f32 %v2267, %v2324
      %2357 = vrot.lane.b32.xlu0 %v1056, 120
      %v2358 = vpop.permute.xlu0 %2357
      %2359 = vrot.lane.b32.xlu0 %v1058, 120
      %v2360 = vpop.permute.xlu0 %2359
      %2361 = vrot.lane.b32.xlu0 %v1187, 120
      %v2362 = vpop.permute.xlu0 %2361
      %2363 = vrot.lane.b32.xlu0 %v1189, 120
      %v2364 = vpop.permute.xlu0 %2363
      %2365 = vrot.lane.b32.xlu0 %v1318, 120
      %v2366 = vpop.permute.xlu0 %2365
      %2367 = vrot.lane.b32.xlu0 %v1320, 120
      %v2368 = vpop.permute.xlu0 %2367
      %2369 = vrot.lane.b32.xlu0 %v1449, 120
      %v2370 = vpop.permute.xlu0 %2369
      %2371 = vrot.lane.b32.xlu0 %v1451, 120
      %v2372 = vpop.permute.xlu0 %2371
      %2373 = vrot.lane.b32.xlu0 %v1580, 120
      %v2374 = vpop.permute.xlu0 %2373
      %2375 = vrot.lane.b32.xlu0 %v1582, 120
      %v2376 = vpop.permute.xlu0 %2375
      %2377 = vrot.lane.b32.xlu0 %v1711, 120
      %v2378 = vpop.permute.xlu0 %2377
      %2379 = vrot.lane.b32.xlu0 %v1713, 120
      %v2380 = vpop.permute.xlu0 %2379
      %2381 = vrot.lane.b32.xlu0 %v1842, 120
      %v2382 = vpop.permute.xlu0 %2381
      %2383 = vrot.lane.b32.xlu0 %v1844, 120
      %v2384 = vpop.permute.xlu0 %2383
      %2385 = vrot.lane.b32.xlu0 %v1973, 120
      %v2386 = vpop.permute.xlu0 %2385
      %2387 = vrot.lane.b32.xlu0 %v1975, 120
      %v2388 = vpop.permute.xlu0 %2387
      %vm2389 = vcmask 982016
      %v2390 = vsel %vm2389, %v2358, %v2360
      %v2391 = vsel %vm2389, %v2362, %v2364
      %v2392 = vsel %vm2389, %v2366, %v2368
      %v2393 = vsel %vm2389, %v2370, %v2372
      %v2394 = vsel %vm2389, %v2374, %v2376
      %v2395 = vsel %vm2389, %v2378, %v2380
      %v2396 = vsel %vm2389, %v2382, %v2384
      %v2397 = vsel %vm2389, %v2386, %v2388
      %v2406 = vadd.f32 %v2333, %v2390
      %v2407 = vadd.f32 %v2334, %v2391
      %v2408 = vadd.f32 %v2335, %v2392
      %v2409 = vadd.f32 %v2336, %v2393
      %v2410 = vadd.f32 %v2337, %v2394
      %v2411 = vadd.f32 %v2338, %v2395
      %v2412 = vadd.f32 %v2339, %v2396
      %v2413 = vadd.f32 %v2340, %v2397
      %2430 = vrot.lane.b32.xlu0 %v1062, 119
      %v2431 = vpop.permute.xlu0 %2430
      %2432 = vrot.lane.b32.xlu0 %v1064, 119
      %v2433 = vpop.permute.xlu0 %2432
      %2434 = vrot.lane.b32.xlu0 %v1193, 119
      %v2435 = vpop.permute.xlu0 %2434
      %2436 = vrot.lane.b32.xlu0 %v1195, 119
      %v2437 = vpop.permute.xlu0 %2436
      %2438 = vrot.lane.b32.xlu0 %v1324, 119
      %v2439 = vpop.permute.xlu0 %2438
      %2440 = vrot.lane.b32.xlu0 %v1326, 119
      %v2441 = vpop.permute.xlu0 %2440
      %2442 = vrot.lane.b32.xlu0 %v1455, 119
      %v2443 = vpop.permute.xlu0 %2442
      %2444 = vrot.lane.b32.xlu0 %v1457, 119
      %v2445 = vpop.permute.xlu0 %2444
      %2446 = vrot.lane.b32.xlu0 %v1586, 119
      %v2447 = vpop.permute.xlu0 %2446
      %2448 = vrot.lane.b32.xlu0 %v1588, 119
      %v2449 = vpop.permute.xlu0 %2448
      %2450 = vrot.lane.b32.xlu0 %v1717, 119
      %v2451 = vpop.permute.xlu0 %2450
      %2452 = vrot.lane.b32.xlu0 %v1719, 119
      %v2453 = vpop.permute.xlu0 %2452
      %2454 = vrot.lane.b32.xlu0 %v1848, 119
      %v2455 = vpop.permute.xlu0 %2454
      %2456 = vrot.lane.b32.xlu0 %v1850, 119
      %v2457 = vpop.permute.xlu0 %2456
      %2458 = vrot.lane.b32.xlu0 %v1979, 119
      %v2459 = vpop.permute.xlu0 %2458
      %2460 = vrot.lane.b32.xlu0 %v1981, 119
      %v2461 = vpop.permute.xlu0 %2460
      %vm2462 = vcmask 973824
      %v2463 = vsel %vm2462, %v2431, %v2433
      %v2464 = vsel %vm2462, %v2435, %v2437
      %v2465 = vsel %vm2462, %v2439, %v2441
      %v2466 = vsel %vm2462, %v2443, %v2445
      %v2467 = vsel %vm2462, %v2447, %v2449
      %v2468 = vsel %vm2462, %v2451, %v2453
      %v2469 = vsel %vm2462, %v2455, %v2457
      %v2470 = vsel %vm2462, %v2459, %v2461
      %v2479 = vadd.f32 %v2406, %v2463
      %v2480 = vadd.f32 %v2407, %v2464
      %v2481 = vadd.f32 %v2408, %v2465
      %v2482 = vadd.f32 %v2409, %v2466
      %v2483 = vadd.f32 %v2410, %v2467
      %v2484 = vadd.f32 %v2411, %v2468
      %v2485 = vadd.f32 %v2412, %v2469
      %v2486 = vadd.f32 %v2413, %v2470
      %2503 = vrot.lane.b32.xlu0 %v1068, 118
      %v2504 = vpop.permute.xlu0 %2503
      %2505 = vrot.lane.b32.xlu0 %v1070, 118
      %v2506 = vpop.permute.xlu0 %2505
      %2507 = vrot.lane.b32.xlu0 %v1199, 118
      %v2508 = vpop.permute.xlu0 %2507
      %2509 = vrot.lane.b32.xlu0 %v1201, 118
      %v2510 = vpop.permute.xlu0 %2509
      %2511 = vrot.lane.b32.xlu0 %v1330, 118
      %v2512 = vpop.permute.xlu0 %2511
      %2513 = vrot.lane.b32.xlu0 %v1332, 118
      %v2514 = vpop.permute.xlu0 %2513
      %2515 = vrot.lane.b32.xlu0 %v1461, 118
      %v2516 = vpop.permute.xlu0 %2515
      %2517 = vrot.lane.b32.xlu0 %v1463, 118
      %v2518 = vpop.permute.xlu0 %2517
      %2519 = vrot.lane.b32.xlu0 %v1592, 118
      %v2520 = vpop.permute.xlu0 %2519
      %2521 = vrot.lane.b32.xlu0 %v1594, 118
      %v2522 = vpop.permute.xlu0 %2521
      %2523 = vrot.lane.b32.xlu0 %v1723, 118
      %v2524 = vpop.permute.xlu0 %2523
      %2525 = vrot.lane.b32.xlu0 %v1725, 118
      %v2526 = vpop.permute.xlu0 %2525
      %2527 = vrot.lane.b32.xlu0 %v1854, 118
      %v2528 = vpop.permute.xlu0 %2527
      %2529 = vrot.lane.b32.xlu0 %v1856, 118
      %v2530 = vpop.permute.xlu0 %2529
      %2531 = vrot.lane.b32.xlu0 %v1985, 118
      %v2532 = vpop.permute.xlu0 %2531
      %2533 = vrot.lane.b32.xlu0 %v1987, 118
      %v2534 = vpop.permute.xlu0 %2533
      %vm2535 = vcmask 965632
      %v2536 = vsel %vm2535, %v2504, %v2506
      %v2537 = vsel %vm2535, %v2508, %v2510
      %v2538 = vsel %vm2535, %v2512, %v2514
      %v2539 = vsel %vm2535, %v2516, %v2518
      %v2540 = vsel %vm2535, %v2520, %v2522
      %v2541 = vsel %vm2535, %v2524, %v2526
      %v2542 = vsel %vm2535, %v2528, %v2530
      %v2543 = vsel %vm2535, %v2532, %v2534
      %v2552 = vadd.f32 %v2479, %v2536
      %v2553 = vadd.f32 %v2480, %v2537
      %v2554 = vadd.f32 %v2481, %v2538
      %v2555 = vadd.f32 %v2482, %v2539
      %v2556 = vadd.f32 %v2483, %v2540
      %v2557 = vadd.f32 %v2484, %v2541
      %v2558 = vadd.f32 %v2485, %v2542
      %v2559 = vadd.f32 %v2486, %v2543
      %2576 = vrot.lane.b32.xlu0 %v1074, 117
      %v2577 = vpop.permute.xlu0 %2576
      %2578 = vrot.lane.b32.xlu0 %v1076, 117
      %v2579 = vpop.permute.xlu0 %2578
      %2580 = vrot.lane.b32.xlu0 %v1205, 117
      %v2581 = vpop.permute.xlu0 %2580
      %2582 = vrot.lane.b32.xlu0 %v1207, 117
      %v2583 = vpop.permute.xlu0 %2582
      %2584 = vrot.lane.b32.xlu0 %v1336, 117
      %v2585 = vpop.permute.xlu0 %2584
      %2586 = vrot.lane.b32.xlu0 %v1338, 117
      %v2587 = vpop.permute.xlu0 %2586
      %2588 = vrot.lane.b32.xlu0 %v1467, 117
      %v2589 = vpop.permute.xlu0 %2588
      %2590 = vrot.lane.b32.xlu0 %v1469, 117
      %v2591 = vpop.permute.xlu0 %2590
      %2592 = vrot.lane.b32.xlu0 %v1598, 117
      %v2593 = vpop.permute.xlu0 %2592
      %2594 = vrot.lane.b32.xlu0 %v1600, 117
      %v2595 = vpop.permute.xlu0 %2594
      %2596 = vrot.lane.b32.xlu0 %v1729, 117
      %v2597 = vpop.permute.xlu0 %2596
      %2598 = vrot.lane.b32.xlu0 %v1731, 117
      %v2599 = vpop.permute.xlu0 %2598
      %2600 = vrot.lane.b32.xlu0 %v1860, 117
      %v2601 = vpop.permute.xlu0 %2600
      %2602 = vrot.lane.b32.xlu0 %v1862, 117
      %v2603 = vpop.permute.xlu0 %2602
      %2604 = vrot.lane.b32.xlu0 %v1991, 117
      %v2605 = vpop.permute.xlu0 %2604
      %2606 = vrot.lane.b32.xlu0 %v1993, 117
      %v2607 = vpop.permute.xlu0 %2606
      %vm2608 = vcmask 957440
      %v2609 = vsel %vm2608, %v2577, %v2579
      %v2610 = vsel %vm2608, %v2581, %v2583
      %v2611 = vsel %vm2608, %v2585, %v2587
      %v2612 = vsel %vm2608, %v2589, %v2591
      %v2613 = vsel %vm2608, %v2593, %v2595
      %v2614 = vsel %vm2608, %v2597, %v2599
      %v2615 = vsel %vm2608, %v2601, %v2603
      %v2616 = vsel %vm2608, %v2605, %v2607
      %v2625 = vadd.f32 %v2552, %v2609
      %v2626 = vadd.f32 %v2553, %v2610
      %v2627 = vadd.f32 %v2554, %v2611
      %v2628 = vadd.f32 %v2555, %v2612
      %v2629 = vadd.f32 %v2556, %v2613
      %v2630 = vadd.f32 %v2557, %v2614
      %v2631 = vadd.f32 %v2558, %v2615
      %v2632 = vadd.f32 %v2559, %v2616
      %v2633 = vld [vmem:[%s3] sm:$0xff]
      %v2634 = vadd.f32 %v2625, %v2633
      %v2635 = vadd.f32 %v2626, %v2633
      %v2636 = vadd.f32 %v2627, %v2633
      %v2637 = vadd.f32 %v2628, %v2633
      %v2638 = vadd.f32 %v2629, %v2633
      %v2639 = vadd.f32 %v2630, %v2633
      %v2640 = vadd.f32 %v2631, %v2633
      %v2641 = vadd.f32 %v2632, %v2633
      %v2642 = vmul.f32 %v2634, %v2634
      %v2643 = vmul.f32 %v2635, %v2635
      %v2644 = vmul.f32 %v2636, %v2636
      %v2645 = vmul.f32 %v2637, %v2637
      %v2646 = vmul.f32 %v2638, %v2638
      %v2647 = vmul.f32 %v2639, %v2639
      %v2648 = vmul.f32 %v2640, %v2640
      %v2649 = vmul.f32 %v2641, %v2641
      %v2650 = vld [vmem:[%s4] sm:$0xff]
      %v2651 = vmul.f32 %v2642, %v2650
      %v2652 = vmul.f32 %v2643, %v2650
      %v2653 = vmul.f32 %v2644, %v2650
      %v2654 = vmul.f32 %v2645, %v2650
      %v2655 = vmul.f32 %v2646, %v2650
      %v2656 = vmul.f32 %v2647, %v2650
      %v2657 = vmul.f32 %v2648, %v2650
      %v2658 = vmul.f32 %v2649, %v2650
      %vm2659 = vcmask 1006592
      %v2660 = vsel %vm2659, %v2651, 0.0
      %2661 = vadd.xlane.f32.xlu0 %v2660
      %v2662 = vpop.xlane.xlu0 %2661
      %v2663 = vsel %vm2659, %v2652, 0.0
      %2664 = vadd.xlane.f32.xlu0 %v2663
      %v2665 = vpop.xlane.xlu0 %2664
      %v2666 = vsel %vm2659, %v2653, 0.0
      %2667 = vadd.xlane.f32.xlu0 %v2666
      %v2668 = vpop.xlane.xlu0 %2667
      %v2669 = vsel %vm2659, %v2654, 0.0
      %2670 = vadd.xlane.f32.xlu0 %v2669
      %v2671 = vpop.xlane.xlu0 %2670
      %v2672 = vsel %vm2659, %v2655, 0.0
      %2673 = vadd.xlane.f32.xlu0 %v2672
      %v2674 = vpop.xlane.xlu0 %2673
      %v2675 = vsel %vm2659, %v2656, 0.0
      %2676 = vadd.xlane.f32.xlu0 %v2675
      %v2677 = vpop.xlane.xlu0 %2676
      %v2678 = vsel %vm2659, %v2657, 0.0
      %2679 = vadd.xlane.f32.xlu0 %v2678
      %v2680 = vpop.xlane.xlu0 %2679
      %v2681 = vsel %vm2659, %v2658, 0.0
      %2682 = vadd.xlane.f32.xlu0 %v2681
      %v2683 = vpop.xlane.xlu0 %2682
      %v2692 = vlaneseq
      %v2693 = vand.u32 %v2692, 127
      %v2694 = vlaneseq
      %v2695 = vshrl.u32 %v2694, 7
      %v2696 = vsub.s32 %v2693, %v2695
      %v2697 = vrot.slane %v2662, %v2696
      %v2698 = vlaneseq
      %v2699 = vshrl.u32 %v2698, 7
      %v2700 = vsub.s32 %v2693, %v2699
      %v2701 = vrot.slane %v2665, %v2700
      %v2702 = vlaneseq
      %v2703 = vshrl.u32 %v2702, 7
      %v2704 = vsub.s32 %v2693, %v2703
      %v2705 = vrot.slane %v2668, %v2704
      %v2706 = vlaneseq
      %v2707 = vshrl.u32 %v2706, 7
      %v2708 = vsub.s32 %v2693, %v2707
      %v2709 = vrot.slane %v2671, %v2708
      %v2710 = vlaneseq
      %v2711 = vshrl.u32 %v2710, 7
      %v2712 = vsub.s32 %v2693, %v2711
      %v2713 = vrot.slane %v2674, %v2712
      %v2714 = vlaneseq
      %v2715 = vshrl.u32 %v2714, 7
      %v2716 = vsub.s32 %v2693, %v2715
      %v2717 = vrot.slane %v2677, %v2716
      %v2718 = vlaneseq
      %v2719 = vshrl.u32 %v2718, 7
      %v2720 = vsub.s32 %v2693, %v2719
      %v2721 = vrot.slane %v2680, %v2720
      %v2722 = vlaneseq
      %v2723 = vshrl.u32 %v2722, 7
      %v2724 = vsub.s32 %v2693, %v2723
      %v2725 = vrot.slane %v2683, %v2724
      %vm2726 = vcmask 1041409
      %v2727 = vsel %vm2726, %v2701, %v2697
      %vm2728 = vcmask 1042434
      %v2729 = vsel %vm2728, %v2705, %v2727
      %vm2730 = vcmask 1043459
      %v2731 = vsel %vm2730, %v2709, %v2729
      %vm2732 = vcmask 1044484
      %v2733 = vsel %vm2732, %v2713, %v2731
      %vm2734 = vcmask 1045509
      %v2735 = vsel %vm2734, %v2717, %v2733
      %vm2736 = vcmask 1046534
      %v2737 = vsel %vm2736, %v2721, %v2735
      %vm2738 = vcmask 1047559
      %v2739 = vsel %vm2738, %v2725, %v2737
      %v2741 = vsel %vm261, %v2739, 0.0
      %2742 = vadd.xlane.f32.xlu0 %v2741
      %v2743 = vpop.xlane.xlu0 %2742
      %s2744 = scalar_lea.vmem %s4, 8
      %v2745 = vld [vmem:[%s2744] sm:$0xff]
      %v2746 = vmul.f32 %v2642, %v2745
      %v2747 = vmul.f32 %v2643, %v2745
      %v2748 = vmul.f32 %v2644, %v2745
      %v2749 = vmul.f32 %v2645, %v2745
      %v2750 = vmul.f32 %v2646, %v2745
      %v2751 = vmul.f32 %v2647, %v2745
      %v2752 = vmul.f32 %v2648, %v2745
      %v2753 = vmul.f32 %v2649, %v2745
      %v2754 = vsel %vm2659, %v2746, 0.0
      %2755 = vadd.xlane.f32.xlu0 %v2754
      %v2756 = vpop.xlane.xlu0 %2755
      %v2757 = vsel %vm2659, %v2747, 0.0
      %2758 = vadd.xlane.f32.xlu0 %v2757
      %v2759 = vpop.xlane.xlu0 %2758
      %v2760 = vsel %vm2659, %v2748, 0.0
      %2761 = vadd.xlane.f32.xlu0 %v2760
      %v2762 = vpop.xlane.xlu0 %2761
      %v2763 = vsel %vm2659, %v2749, 0.0
      %2764 = vadd.xlane.f32.xlu0 %v2763
      %v2765 = vpop.xlane.xlu0 %2764
      %v2766 = vsel %vm2659, %v2750, 0.0
      %2767 = vadd.xlane.f32.xlu0 %v2766
      %v2768 = vpop.xlane.xlu0 %2767
      %v2769 = vsel %vm2659, %v2751, 0.0
      %2770 = vadd.xlane.f32.xlu0 %v2769
      %v2771 = vpop.xlane.xlu0 %2770
      %v2772 = vsel %vm2659, %v2752, 0.0
      %2773 = vadd.xlane.f32.xlu0 %v2772
      %v2774 = vpop.xlane.xlu0 %2773
      %v2775 = vsel %vm2659, %v2753, 0.0
      %2776 = vadd.xlane.f32.xlu0 %v2775
      %v2777 = vpop.xlane.xlu0 %2776
      %v2786 = vlaneseq
      %v2787 = vshrl.u32 %v2786, 7
      %v2788 = vsub.s32 %v2693, %v2787
      %v2789 = vrot.slane %v2756, %v2788
      %v2790 = vlaneseq
      %v2791 = vshrl.u32 %v2790, 7
      %v2792 = vsub.s32 %v2693, %v2791
      %v2793 = vrot.slane %v2759, %v2792
      %v2794 = vlaneseq
      %v2795 = vshrl.u32 %v2794, 7
      %v2796 = vsub.s32 %v2693, %v2795
      %v2797 = vrot.slane %v2762, %v2796
      %v2798 = vlaneseq
      %v2799 = vshrl.u32 %v2798, 7
      %v2800 = vsub.s32 %v2693, %v2799
      %v2801 = vrot.slane %v2765, %v2800
      %v2802 = vlaneseq
      %v2803 = vshrl.u32 %v2802, 7
      %v2804 = vsub.s32 %v2693, %v2803
      %v2805 = vrot.slane %v2768, %v2804
      %v2806 = vlaneseq
      %v2807 = vshrl.u32 %v2806, 7
      %v2808 = vsub.s32 %v2693, %v2807
      %v2809 = vrot.slane %v2771, %v2808
      %v2810 = vlaneseq
      %v2811 = vshrl.u32 %v2810, 7
      %v2812 = vsub.s32 %v2693, %v2811
      %v2813 = vrot.slane %v2774, %v2812
      %v2814 = vlaneseq
      %v2815 = vshrl.u32 %v2814, 7
      %v2816 = vsub.s32 %v2693, %v2815
      %v2817 = vrot.slane %v2777, %v2816
      %v2818 = vsel %vm2726, %v2793, %v2789
      %v2819 = vsel %vm2728, %v2797, %v2818
      %v2820 = vsel %vm2730, %v2801, %v2819
      %v2821 = vsel %vm2732, %v2805, %v2820
      %v2822 = vsel %vm2734, %v2809, %v2821
      %v2823 = vsel %vm2736, %v2813, %v2822
      %v2824 = vsel %vm2738, %v2817, %v2823
      %v2826 = vsel %vm261, %v2824, 0.0
      %2827 = vadd.xlane.f32.xlu0 %v2826
      %v2828 = vpop.xlane.xlu0 %2827
      %s2829 = scalar_lea.vmem %s4, 16
      %v2830 = vld [vmem:[%s2829] sm:$0xff]
      %v2831 = vmul.f32 %v2642, %v2830
      %v2832 = vmul.f32 %v2643, %v2830
      %v2833 = vmul.f32 %v2644, %v2830
      %v2834 = vmul.f32 %v2645, %v2830
      %v2835 = vmul.f32 %v2646, %v2830
      %v2836 = vmul.f32 %v2647, %v2830
      %v2837 = vmul.f32 %v2648, %v2830
      %v2838 = vmul.f32 %v2649, %v2830
      %v2839 = vsel %vm2659, %v2831, 0.0
      %2840 = vadd.xlane.f32.xlu0 %v2839
      %v2841 = vpop.xlane.xlu0 %2840
      %v2842 = vsel %vm2659, %v2832, 0.0
      %2843 = vadd.xlane.f32.xlu0 %v2842
      %v2844 = vpop.xlane.xlu0 %2843
      %v2845 = vsel %vm2659, %v2833, 0.0
      %2846 = vadd.xlane.f32.xlu0 %v2845
      %v2847 = vpop.xlane.xlu0 %2846
      %v2848 = vsel %vm2659, %v2834, 0.0
      %2849 = vadd.xlane.f32.xlu0 %v2848
      %v2850 = vpop.xlane.xlu0 %2849
      %v2851 = vsel %vm2659, %v2835, 0.0
      %2852 = vadd.xlane.f32.xlu0 %v2851
      %v2853 = vpop.xlane.xlu0 %2852
      %v2854 = vsel %vm2659, %v2836, 0.0
      %2855 = vadd.xlane.f32.xlu0 %v2854
      %v2856 = vpop.xlane.xlu0 %2855
      %v2857 = vsel %vm2659, %v2837, 0.0
      %2858 = vadd.xlane.f32.xlu0 %v2857
      %v2859 = vpop.xlane.xlu0 %2858
      %v2860 = vsel %vm2659, %v2838, 0.0
      %2861 = vadd.xlane.f32.xlu0 %v2860
      %v2862 = vpop.xlane.xlu0 %2861
      %v2871 = vlaneseq
      %v2872 = vshrl.u32 %v2871, 7
      %v2873 = vsub.s32 %v2693, %v2872
      %v2874 = vrot.slane %v2841, %v2873
      %v2875 = vlaneseq
      %v2876 = vshrl.u32 %v2875, 7
      %v2877 = vsub.s32 %v2693, %v2876
      %v2878 = vrot.slane %v2844, %v2877
      %v2879 = vlaneseq
      %v2880 = vshrl.u32 %v2879, 7
      %v2881 = vsub.s32 %v2693, %v2880
      %v2882 = vrot.slane %v2847, %v2881
      %v2883 = vlaneseq
      %v2884 = vshrl.u32 %v2883, 7
      %v2885 = vsub.s32 %v2693, %v2884
      %v2886 = vrot.slane %v2850, %v2885
      %v2887 = vlaneseq
      %v2888 = vshrl.u32 %v2887, 7
      %v2889 = vsub.s32 %v2693, %v2888
      %v2890 = vrot.slane %v2853, %v2889
      %v2891 = vlaneseq
      %v2892 = vshrl.u32 %v2891, 7
      %v2893 = vsub.s32 %v2693, %v2892
      %v2894 = vrot.slane %v2856, %v2893
      %v2895 = vlaneseq
      %v2896 = vshrl.u32 %v2895, 7
      %v2897 = vsub.s32 %v2693, %v2896
      %v2898 = vrot.slane %v2859, %v2897
      %v2899 = vlaneseq
      %v2900 = vshrl.u32 %v2899, 7
      %v2901 = vsub.s32 %v2693, %v2900
      %v2902 = vrot.slane %v2862, %v2901
      %v2903 = vsel %vm2726, %v2878, %v2874
      %v2904 = vsel %vm2728, %v2882, %v2903
      %v2905 = vsel %vm2730, %v2886, %v2904
      %v2906 = vsel %vm2732, %v2890, %v2905
      %v2907 = vsel %vm2734, %v2894, %v2906
      %v2908 = vsel %vm2736, %v2898, %v2907
      %v2909 = vsel %vm2738, %v2902, %v2908
      %v2911 = vsel %vm261, %v2909, 0.0
      %2912 = vadd.xlane.f32.xlu0 %v2911
      %v2913 = vpop.xlane.xlu0 %2912
      %s2914 = scalar_lea.vmem %s4, 24
      %v2915 = vld [vmem:[%s2914] sm:$0xff]
      %v2916 = vmul.f32 %v2642, %v2915
      %v2917 = vmul.f32 %v2643, %v2915
      %v2918 = vmul.f32 %v2644, %v2915
      %v2919 = vmul.f32 %v2645, %v2915
      %v2920 = vmul.f32 %v2646, %v2915
      %v2921 = vmul.f32 %v2647, %v2915
      %v2922 = vmul.f32 %v2648, %v2915
      %v2923 = vmul.f32 %v2649, %v2915
      %v2924 = vsel %vm2659, %v2916, 0.0
      %2925 = vadd.xlane.f32.xlu0 %v2924
      %v2926 = vpop.xlane.xlu0 %2925
      %v2927 = vsel %vm2659, %v2917, 0.0
      %2928 = vadd.xlane.f32.xlu0 %v2927
      %v2929 = vpop.xlane.xlu0 %2928
      %v2930 = vsel %vm2659, %v2918, 0.0
      %2931 = vadd.xlane.f32.xlu0 %v2930
      %v2932 = vpop.xlane.xlu0 %2931
      %v2933 = vsel %vm2659, %v2919, 0.0
      %2934 = vadd.xlane.f32.xlu0 %v2933
      %v2935 = vpop.xlane.xlu0 %2934
      %v2936 = vsel %vm2659, %v2920, 0.0
      %2937 = vadd.xlane.f32.xlu0 %v2936
      %v2938 = vpop.xlane.xlu0 %2937
      %v2939 = vsel %vm2659, %v2921, 0.0
      %2940 = vadd.xlane.f32.xlu0 %v2939
      %v2941 = vpop.xlane.xlu0 %2940
      %v2942 = vsel %vm2659, %v2922, 0.0
      %2943 = vadd.xlane.f32.xlu0 %v2942
      %v2944 = vpop.xlane.xlu0 %2943
      %v2945 = vsel %vm2659, %v2923, 0.0
      %2946 = vadd.xlane.f32.xlu0 %v2945
      %v2947 = vpop.xlane.xlu0 %2946
      %v2956 = vlaneseq
      %v2957 = vshrl.u32 %v2956, 7
      %v2958 = vsub.s32 %v2693, %v2957
      %v2959 = vrot.slane %v2926, %v2958
      %v2960 = vlaneseq
      %v2961 = vshrl.u32 %v2960, 7
      %v2962 = vsub.s32 %v2693, %v2961
      %v2963 = vrot.slane %v2929, %v2962
      %v2964 = vlaneseq
      %v2965 = vshrl.u32 %v2964, 7
      %v2966 = vsub.s32 %v2693, %v2965
      %v2967 = vrot.slane %v2932, %v2966
      %v2968 = vlaneseq
      %v2969 = vshrl.u32 %v2968, 7
      %v2970 = vsub.s32 %v2693, %v2969
      %v2971 = vrot.slane %v2935, %v2970
      %v2972 = vlaneseq
      %v2973 = vshrl.u32 %v2972, 7
      %v2974 = vsub.s32 %v2693, %v2973
      %v2975 = vrot.slane %v2938, %v2974
      %v2976 = vlaneseq
      %v2977 = vshrl.u32 %v2976, 7
      %v2978 = vsub.s32 %v2693, %v2977
      %v2979 = vrot.slane %v2941, %v2978
      %v2980 = vlaneseq
      %v2981 = vshrl.u32 %v2980, 7
      %v2982 = vsub.s32 %v2693, %v2981
      %v2983 = vrot.slane %v2944, %v2982
      %v2984 = vlaneseq
      %v2985 = vshrl.u32 %v2984, 7
      %v2986 = vsub.s32 %v2693, %v2985
      %v2987 = vrot.slane %v2947, %v2986
      %v2988 = vsel %vm2726, %v2963, %v2959
      %v2989 = vsel %vm2728, %v2967, %v2988
      %v2990 = vsel %vm2730, %v2971, %v2989
      %v2991 = vsel %vm2732, %v2975, %v2990
      %v2992 = vsel %vm2734, %v2979, %v2991
      %v2993 = vsel %vm2736, %v2983, %v2992
      %v2994 = vsel %vm2738, %v2987, %v2993
      %v2996 = vsel %vm261, %v2994, 0.0
      %2997 = vadd.xlane.f32.xlu0 %v2996
      %v2998 = vpop.xlane.xlu0 %2997
      %vm2999 = vcmask 7168
      %v3000 = vsel %vm2999, %v2743, %v2828
      %vm3001 = vcmask 15360
      %v3002 = vsel %vm3001, %v3000, %v2913
      %vm3003 = vcmask 23552
      %v3004 = vsel %vm3003, %v3002, %v2998
      %v3005 = vld [vmem:[%s5] sm:$0x1]
      %v3007 = vlaneseq
      %v3008 = vshrl.u32 %v3007, 7
      %v3009 = vsub.s32 0, %v3008
      %v3010 = vrot.slane %v3005, %v3009
      %v3012 = vadd.f32 %v3004, %v3010
      %vm3013 = vcmask 31744
      %3014 = vst.msk [vmem:[%s251] sm:$0xff] %vm3013, %v3012
      %p3015 = scmp.lt.s32.totalorder %s17, 1
      %s3016 = scalar_select %p3015, %s17, 1
      %s3017 = smul.addr %s3016, 8
      %s3018 = scalar_lea.vmem %s6, %s3017
      // Predicated region
      $region45: #{sccnet_forward.1} parent=43 // pred_check
        %p3019 = pneg %p166
      $region46: #{sccnet_forward.1} parent=43 // pred_check_branch
        %3021 = sbr.rel (%p3019) target = $region48
      $region47: #{sccnet_forward.1} parent=43 // pred_region
        _
      $region48: #{sccnet_forward.1} parent=43 // pred_fallthru
        _
    $region44: #{sccnet_forward.1} parent=5 // pred_fallthru
      _
    %p3022 = scmp.le.s32.totalorder 2, %s12
    // Predicated region
    $region49: #{sccnet_forward.1} parent=5 // pred_check
      %p3023 = pneg %p3022
    $region50: #{sccnet_forward.1} parent=5 // pred_check_branch
      %3025 = sbr.rel (%p3023) target = $region52
    $region51: #{sccnet_forward.1} parent=5 // pred_region
      %s3026 = ssub.s32 %s12, 2
      // Predicated region
      $region53: #{sccnet_forward.1} parent=51 // pred_check
        %p3027 = pneg %p172
      $region54: #{sccnet_forward.1} parent=51 // pred_check_branch
        %3029 = sbr.rel (%p3027) target = $region56
      $region55: #{sccnet_forward.1} parent=51 // pred_region
        %p3030 = scmp.lt.s32.totalorder %s18, 1
        %s3031 = scalar_select %p3030, %s18, 1
        %s3032 = smul.addr %s3031, 8
        %s3033 = scalar_lea.vmem %s6, %s3032
      $region56: #{sccnet_forward.1} parent=51 // pred_fallthru
        _
    $region52: #{sccnet_forward.1} parent=5 // pred_fallthru
      _
  $region6: #{sccnet_forward.1} parent=0 // loop_footer
    %s16 = sadd.s32 1, %s12
  $region7: #{sccnet_forward.1} parent=0 // loop_footer_branch
    %11 = sbr.rel target = $region3
  $region8: #{sccnet_forward.1} parent=0 // loop_exit
    _

</llo_original>
